<compile_context>
chip_gen: v7x
topology: tpu7x:2x2x1
jax: 0.10.0
libtpu: 0.0.40
codegen_flags: <defaults>
</compile_context>

<pallas_src>
import functools

import jax
import jax.numpy as jnp
from jax.experimental import pallas as pl
from jax.experimental.pallas import tpu as pltpu

_EPS = 1e-5


# ----------------------------- Pallas kernel ------------------------------- #

def _make_body_kernel(H, W, C, depth):
    WC = W * C

    def kernel(x_ref, wb_ref, b_ref, o_ref):
        # x_ref:  (1, H, WC)            lane-dense activation for one image
        # wb_ref: (2*n_mini, 3*WC, WC)  banded conv weights (BN scale folded in)
        # b_ref:  (2*n_mini, 1, WC)     folded per-lane bias rows
        x = x_ref[0]                                   # (H, WC) f32
        zrow = jnp.zeros((1, WC), jnp.float32)         # hoisted; reused by all convs

        def conv3x3(a, ci):
            # Row-shifted copies give the three vertical taps (zero padding in H);
            # the horizontal taps live inside the banded weight -> one matmul per conv.
            s_up = jnp.concatenate([zrow, a[:-1, :]], axis=0)    # in[y-1]
            s_dn = jnp.concatenate([a[1:, :], zrow], axis=0)     # in[y+1]
            p = jnp.concatenate([s_up, a, s_dn], axis=1)         # (H, 3*WC), lane-dense
            out = jnp.dot(p, wb_ref[ci], preferred_element_type=jnp.float32)
            return out + b_ref[ci]                               # (H, WC) + (1, WC)

        def mini(a, i):
            z = jnp.maximum(conv3x3(a, 2 * i), 0.0)   # conv1 + BN1 + ReLU
            z = conv3x3(z, 2 * i + 1)                 # conv2 + BN2
            return a + z                              # mini residual

        tmp = x
        idx = 0
        for _ in range(depth):                        # ResidualMaxiBlock
            z = tmp
            for _ in range(3):
                z = mini(z, idx)
                idx += 1
            tmp = tmp + z                             # maxi residual
        tmp = mini(tmp, idx)                          # trailing ResidualMiniBlock
        o_ref[0] = x + tmp                            # outer BodyModel residual

    return kernel


@functools.partial(jax.jit, static_argnames=("depth",))
def body_model_forward(x_nchw, wb_all, bias_all, *, depth):
    """BodyModel.forward; x_nchw: (N, C, H, W) float32."""
    N, C, H, W = x_nchw.shape
    WC = W * C
    x = jnp.transpose(x_nchw, (0, 2, 3, 1)).reshape(N, H, WC)   # NCHW -> (N, H, W*C)

    kernel = _make_body_kernel(H, W, C, depth)
    y = pl.pallas_call(
        kernel,
        out_shape=jax.ShapeDtypeStruct((N, H, WC), jnp.float32),
        grid=(N,),
        in_specs=[
            pl.BlockSpec((1, H, WC), lambda n: (n, 0, 0)),
            pl.BlockSpec(wb_all.shape, lambda n: (0, 0, 0)),
            pl.BlockSpec(bias_all.shape, lambda n: (0, 0, 0)),
        ],
        out_specs=pl.BlockSpec((1, H, WC), lambda n: (n, 0, 0)),
        compiler_params=pltpu.CompilerParams(
            dimension_semantics=("parallel",)),        # N=2 images -> both v7x TensorCores
    )(x, wb_all, bias_all)

    return jnp.transpose(y.reshape(N, H, W, C), (0, 3, 1, 2))   # back to NCHW


# --------------------------- Parameter creation ----------------------------- #

def init_mini_raw(key, C):
    """Synthetic params for one ResidualMiniBlock: conv HWIO weights/bias, BN gamma/beta."""
    ks = jax.random.split(key, 8)

    def conv_w(k):
        return 0.1 * jax.random.normal(k, (3, 3, C, C), jnp.float32)

    def vec(k, off=0.0):
        return off + 0.1 * jax.random.normal(k, (C,), jnp.float32)

    return (conv_w(ks[0]), vec(ks[1]), vec(ks[2], 1.0), vec(ks[3]),
            conv_w(ks[4]), vec(ks[5]), vec(ks[6], 1.0), vec(ks[7]))


def init_body_raw(key, C, depth):
    n_mini = depth * 3 + 1
    return [init_mini_raw(k, C) for k in jax.random.split(key, n_mini)]


def _band_one_conv(w_hwio, conv_b, gamma, beta, Wdim, C):
    """Fold eval-mode BN (mean=0, var=1) into the conv, then build the banded
    (3*W*C, W*C) weight so the whole 3x3 conv is one lane-dense matmul."""
    scale = gamma / jnp.sqrt(1.0 + _EPS)          # running_var = 1
    wf = w_hwio * scale                           # scale output channels
    bias_c = conv_b * scale + beta                # running_mean = 0
    blocks = []
    for ky in range(3):
        m = sum(jnp.kron(jnp.eye(Wdim, k=1 - kx, dtype=jnp.float32), wf[ky, kx])
                for kx in range(3))
        blocks.append(m)
    wb = jnp.concatenate(blocks, axis=0)          # (3*W*C, W*C)
    bias_row = jnp.tile(bias_c, Wdim)[None, :]    # (1, W*C)
    return wb, bias_row


def build_kernel_params(raw_params, Wdim, C):
    wb, br = [], []
    for p in raw_params:
        w1, b1, g1, be1, w2, b2, g2, be2 = p
        for (w, b, g, be) in ((w1, b1, g1, be1), (w2, b2, g2, be2)):
            m, r = _band_one_conv(w, b, g, be, Wdim, C)
            wb.append(m)
            br.append(r)
    return jnp.stack(wb), jnp.stack(br)           # (2*n_mini, 3WC, WC), (2*n_mini, 1, WC)


# --------------------------- Pure-JAX reference ------------------------------ #

def _conv3x3_ref(x, w, b):
    y = jax.lax.conv_general_dilated(
        x, w, window_strides=(1, 1), padding="SAME",
        dimension_numbers=("NHWC", "HWIO", "NHWC"))
    return y + b.reshape(1, 1, 1, -1)


def _bn_ref(z, gamma, beta):
    return z / jnp.sqrt(1.0 + _EPS) * gamma + beta   # eval-mode, mean=0, var=1


def _mini_ref(x, p):
    w1, b1, g1, be1, w2, b2, g2, be2 = p
    z = jnp.maximum(_bn_ref(_conv3x3_ref(x, w1, b1), g1, be1), 0.0)
    z = _bn_ref(_conv3x3_ref(z, w2, b2), g2, be2)
    return x + z


def body_model_reference(x_nchw, raw_params, depth):
    x = jnp.transpose(x_nchw, (0, 2, 3, 1))
    tmp = x
    idx = 0
    for _ in range(depth):
        z = tmp
        for _ in range(3):
            z = _mini_ref(z, raw_params[idx]); idx += 1
        tmp = tmp + z
    tmp = _mini_ref(tmp, raw_params[idx])
    return jnp.transpose(x + tmp, (0, 3, 1, 2))


# ----------------------------------- main ------------------------------------ #

if __name__ == "__main__":
    N, C, H, W = 2, 8, 16, 16      # W*C = 128 -> lane-dense kernel layout
    depth = 1

    key = jax.random.PRNGKey(0)
    kx, kp = jax.random.split(key)
    x = jax.random.normal(kx, (N, C, H, W), jnp.float32)   # PyTorch-style NCHW
    raw_params = init_body_raw(kp, C, depth)
    wb_all, bias_all = build_kernel_params(raw_params, W, C)

    y = body_model_forward(x, wb_all, bias_all, depth=depth)
    y = jax.block_until_ready(y)

    y_ref = body_model_reference(x, raw_params, depth)
    max_diff = float(jnp.max(jnp.abs(y - y_ref)))
    assert y.shape == x.shape and max_diff < 1e-3, f"mismatch: {max_diff}"

    print("KERNEL_OK")
</pallas_src>

<mosaic_0001>
module attributes {stable_mosaic.version = 11 : i64} {
  func.func @kernel(%arg0: i32, %arg1: memref<1x16x128xf32, #tpu.memory_space<vmem>>, %arg2: memref<8x384x128xf32, #tpu.memory_space<vmem>>, %arg3: memref<8x1x128xf32, #tpu.memory_space<vmem>>, %arg4: memref<1x16x128xf32, #tpu.memory_space<vmem>>) attributes {dimension_semantics = [#tpu.dimension_semantics<parallel>], iteration_bounds = array<i64: 2>, scalar_prefetch = 0 : i64, scratch_operands = 0 : i64, tpu.core_type = #tpu.core_type<tc>, window_params = [{transform_indices = @transform_0, window_bounds = array<i64: 1, 16, 128>}, {pipeline_mode = #tpu.pipeline_mode<synchronous>, transform_indices = @transform_1, window_bounds = array<i64: 8, 384, 128>}, {pipeline_mode = #tpu.pipeline_mode<synchronous>, transform_indices = @transform_2, window_bounds = array<i64: 8, 1, 128>}, {transform_indices = @transform_3, window_bounds = array<i64: 1, 16, 128>}]} {
    %c0 = arith.constant 0 : index
    %c0_0 = arith.constant 0 : index
    %c0_1 = arith.constant 0 : index
    %0 = vector.load %arg1[%c0, %c0_0, %c0_1] : memref<1x16x128xf32, #tpu.memory_space<vmem>>, vector<1x16x128xf32>
    %1 = vector.shape_cast %0 : vector<1x16x128xf32> to vector<16x128xf32>
    %cst = arith.constant 0.000000e+00 : f32
    %2 = vector.broadcast %cst : f32 to vector<1x128xf32>
    %3 = vector.extract_strided_slice %1 {offsets = [0, 0], sizes = [15, 128], strides = [1, 1]} : vector<16x128xf32> to vector<15x128xf32>
    %4 = tpu.concatenate %2, %3 in 0 : vector<1x128xf32>, vector<15x128xf32> -> vector<16x128xf32>
    %5 = vector.extract_strided_slice %1 {offsets = [1, 0], sizes = [15, 128], strides = [1, 1]} : vector<16x128xf32> to vector<15x128xf32>
    %6 = tpu.concatenate %5, %2 in 0 : vector<15x128xf32>, vector<1x128xf32> -> vector<16x128xf32>
    %7 = tpu.concatenate %4, %1, %6 in 1 : vector<16x128xf32>, vector<16x128xf32>, vector<16x128xf32> -> vector<16x384xf32>
    %c0_2 = arith.constant 0 : index
    %c0_3 = arith.constant 0 : index
    %c0_4 = arith.constant 0 : index
    %8 = vector.load %arg2[%c0_2, %c0_3, %c0_4] : memref<8x384x128xf32, #tpu.memory_space<vmem>>, vector<1x384x128xf32>
    %9 = vector.shape_cast %8 : vector<1x384x128xf32> to vector<384x128xf32>
    %cst_5 = arith.constant dense<0.000000e+00> : vector<16x128xf32>
    %10 = tpu.matmul %7, %9, %cst_5 {dimension_numbers = #tpu.dot_dimension_numbers<[1], [0], [0], [1], [0, 0, 1, 1], [], []>} : vector<16x384xf32>, vector<384x128xf32>, vector<16x128xf32> -> vector<16x128xf32>
    %c0_6 = arith.constant 0 : index
    %c0_7 = arith.constant 0 : index
    %c0_8 = arith.constant 0 : index
    %11 = vector.load %arg3[%c0_6, %c0_7, %c0_8] : memref<8x1x128xf32, #tpu.memory_space<vmem>>, vector<1x1x128xf32>
    %12 = vector.shape_cast %11 : vector<1x1x128xf32> to vector<1x128xf32>
    %13 = vector.broadcast %12 : vector<1x128xf32> to vector<16x128xf32>
    %14 = arith.addf %10, %13 : vector<16x128xf32>
    %cst_9 = arith.constant 0.000000e+00 : f32
    %15 = vector.broadcast %cst_9 : f32 to vector<16x128xf32>
    %16 = arith.maximumf %14, %15 : vector<16x128xf32>
    %17 = vector.extract_strided_slice %16 {offsets = [0, 0], sizes = [15, 128], strides = [1, 1]} : vector<16x128xf32> to vector<15x128xf32>
    %18 = tpu.concatenate %2, %17 in 0 : vector<1x128xf32>, vector<15x128xf32> -> vector<16x128xf32>
    %19 = vector.extract_strided_slice %16 {offsets = [1, 0], sizes = [15, 128], strides = [1, 1]} : vector<16x128xf32> to vector<15x128xf32>
    %20 = tpu.concatenate %19, %2 in 0 : vector<15x128xf32>, vector<1x128xf32> -> vector<16x128xf32>
    %21 = tpu.concatenate %18, %16, %20 in 1 : vector<16x128xf32>, vector<16x128xf32>, vector<16x128xf32> -> vector<16x384xf32>
    %c1 = arith.constant 1 : index
    %c0_10 = arith.constant 0 : index
    %c0_11 = arith.constant 0 : index
    %22 = vector.load %arg2[%c1, %c0_10, %c0_11] : memref<8x384x128xf32, #tpu.memory_space<vmem>>, vector<1x384x128xf32>
    %23 = vector.shape_cast %22 : vector<1x384x128xf32> to vector<384x128xf32>
    %cst_12 = arith.constant dense<0.000000e+00> : vector<16x128xf32>
    %24 = tpu.matmul %21, %23, %cst_12 {dimension_numbers = #tpu.dot_dimension_numbers<[1], [0], [0], [1], [0, 0, 1, 1], [], []>} : vector<16x384xf32>, vector<384x128xf32>, vector<16x128xf32> -> vector<16x128xf32>
    %c1_13 = arith.constant 1 : index
    %c0_14 = arith.constant 0 : index
    %c0_15 = arith.constant 0 : index
    %25 = vector.load %arg3[%c1_13, %c0_14, %c0_15] : memref<8x1x128xf32, #tpu.memory_space<vmem>>, vector<1x1x128xf32>
    %26 = vector.shape_cast %25 : vector<1x1x128xf32> to vector<1x128xf32>
    %27 = vector.broadcast %26 : vector<1x128xf32> to vector<16x128xf32>
    %28 = arith.addf %24, %27 : vector<16x128xf32>
    %29 = arith.addf %1, %28 : vector<16x128xf32>
    %30 = vector.extract_strided_slice %29 {offsets = [0, 0], sizes = [15, 128], strides = [1, 1]} : vector<16x128xf32> to vector<15x128xf32>
    %31 = tpu.concatenate %2, %30 in 0 : vector<1x128xf32>, vector<15x128xf32> -> vector<16x128xf32>
    %32 = vector.extract_strided_slice %29 {offsets = [1, 0], sizes = [15, 128], strides = [1, 1]} : vector<16x128xf32> to vector<15x128xf32>
    %33 = tpu.concatenate %32, %2 in 0 : vector<15x128xf32>, vector<1x128xf32> -> vector<16x128xf32>
    %34 = tpu.concatenate %31, %29, %33 in 1 : vector<16x128xf32>, vector<16x128xf32>, vector<16x128xf32> -> vector<16x384xf32>
    %c2 = arith.constant 2 : index
    %c0_16 = arith.constant 0 : index
    %c0_17 = arith.constant 0 : index
    %35 = vector.load %arg2[%c2, %c0_16, %c0_17] : memref<8x384x128xf32, #tpu.memory_space<vmem>>, vector<1x384x128xf32>
    %36 = vector.shape_cast %35 : vector<1x384x128xf32> to vector<384x128xf32>
    %cst_18 = arith.constant dense<0.000000e+00> : vector<16x128xf32>
    %37 = tpu.matmul %34, %36, %cst_18 {dimension_numbers = #tpu.dot_dimension_numbers<[1], [0], [0], [1], [0, 0, 1, 1], [], []>} : vector<16x384xf32>, vector<384x128xf32>, vector<16x128xf32> -> vector<16x128xf32>
    %c2_19 = arith.constant 2 : index
    %c0_20 = arith.constant 0 : index
    %c0_21 = arith.constant 0 : index
    %38 = vector.load %arg3[%c2_19, %c0_20, %c0_21] : memref<8x1x128xf32, #tpu.memory_space<vmem>>, vector<1x1x128xf32>
    %39 = vector.shape_cast %38 : vector<1x1x128xf32> to vector<1x128xf32>
    %40 = vector.broadcast %39 : vector<1x128xf32> to vector<16x128xf32>
    %41 = arith.addf %37, %40 : vector<16x128xf32>
    %cst_22 = arith.constant 0.000000e+00 : f32
    %42 = vector.broadcast %cst_22 : f32 to vector<16x128xf32>
    %43 = arith.maximumf %41, %42 : vector<16x128xf32>
    %44 = vector.extract_strided_slice %43 {offsets = [0, 0], sizes = [15, 128], strides = [1, 1]} : vector<16x128xf32> to vector<15x128xf32>
    %45 = tpu.concatenate %2, %44 in 0 : vector<1x128xf32>, vector<15x128xf32> -> vector<16x128xf32>
    %46 = vector.extract_strided_slice %43 {offsets = [1, 0], sizes = [15, 128], strides = [1, 1]} : vector<16x128xf32> to vector<15x128xf32>
    %47 = tpu.concatenate %46, %2 in 0 : vector<15x128xf32>, vector<1x128xf32> -> vector<16x128xf32>
    %48 = tpu.concatenate %45, %43, %47 in 1 : vector<16x128xf32>, vector<16x128xf32>, vector<16x128xf32> -> vector<16x384xf32>
    %c3 = arith.constant 3 : index
    %c0_23 = arith.constant 0 : index
    %c0_24 = arith.constant 0 : index
    %49 = vector.load %arg2[%c3, %c0_23, %c0_24] : memref<8x384x128xf32, #tpu.memory_space<vmem>>, vector<1x384x128xf32>
    %50 = vector.shape_cast %49 : vector<1x384x128xf32> to vector<384x128xf32>
    %cst_25 = arith.constant dense<0.000000e+00> : vector<16x128xf32>
    %51 = tpu.matmul %48, %50, %cst_25 {dimension_numbers = #tpu.dot_dimension_numbers<[1], [0], [0], [1], [0, 0, 1, 1], [], []>} : vector<16x384xf32>, vector<384x128xf32>, vector<16x128xf32> -> vector<16x128xf32>
    %c3_26 = arith.constant 3 : index
    %c0_27 = arith.constant 0 : index
    %c0_28 = arith.constant 0 : index
    %52 = vector.load %arg3[%c3_26, %c0_27, %c0_28] : memref<8x1x128xf32, #tpu.memory_space<vmem>>, vector<1x1x128xf32>
    %53 = vector.shape_cast %52 : vector<1x1x128xf32> to vector<1x128xf32>
    %54 = vector.broadcast %53 : vector<1x128xf32> to vector<16x128xf32>
    %55 = arith.addf %51, %54 : vector<16x128xf32>
    %56 = arith.addf %29, %55 : vector<16x128xf32>
    %57 = vector.extract_strided_slice %56 {offsets = [0, 0], sizes = [15, 128], strides = [1, 1]} : vector<16x128xf32> to vector<15x128xf32>
    %58 = tpu.concatenate %2, %57 in 0 : vector<1x128xf32>, vector<15x128xf32> -> vector<16x128xf32>
    %59 = vector.extract_strided_slice %56 {offsets = [1, 0], sizes = [15, 128], strides = [1, 1]} : vector<16x128xf32> to vector<15x128xf32>
    %60 = tpu.concatenate %59, %2 in 0 : vector<15x128xf32>, vector<1x128xf32> -> vector<16x128xf32>
    %61 = tpu.concatenate %58, %56, %60 in 1 : vector<16x128xf32>, vector<16x128xf32>, vector<16x128xf32> -> vector<16x384xf32>
    %c4 = arith.constant 4 : index
    %c0_29 = arith.constant 0 : index
    %c0_30 = arith.constant 0 : index
    %62 = vector.load %arg2[%c4, %c0_29, %c0_30] : memref<8x384x128xf32, #tpu.memory_space<vmem>>, vector<1x384x128xf32>
    %63 = vector.shape_cast %62 : vector<1x384x128xf32> to vector<384x128xf32>
    %cst_31 = arith.constant dense<0.000000e+00> : vector<16x128xf32>
    %64 = tpu.matmul %61, %63, %cst_31 {dimension_numbers = #tpu.dot_dimension_numbers<[1], [0], [0], [1], [0, 0, 1, 1], [], []>} : vector<16x384xf32>, vector<384x128xf32>, vector<16x128xf32> -> vector<16x128xf32>
    %c4_32 = arith.constant 4 : index
    %c0_33 = arith.constant 0 : index
    %c0_34 = arith.constant 0 : index
    %65 = vector.load %arg3[%c4_32, %c0_33, %c0_34] : memref<8x1x128xf32, #tpu.memory_space<vmem>>, vector<1x1x128xf32>
    %66 = vector.shape_cast %65 : vector<1x1x128xf32> to vector<1x128xf32>
    %67 = vector.broadcast %66 : vector<1x128xf32> to vector<16x128xf32>
    %68 = arith.addf %64, %67 : vector<16x128xf32>
    %cst_35 = arith.constant 0.000000e+00 : f32
    %69 = vector.broadcast %cst_35 : f32 to vector<16x128xf32>
    %70 = arith.maximumf %68, %69 : vector<16x128xf32>
    %71 = vector.extract_strided_slice %70 {offsets = [0, 0], sizes = [15, 128], strides = [1, 1]} : vector<16x128xf32> to vector<15x128xf32>
    %72 = tpu.concatenate %2, %71 in 0 : vector<1x128xf32>, vector<15x128xf32> -> vector<16x128xf32>
    %73 = vector.extract_strided_slice %70 {offsets = [1, 0], sizes = [15, 128], strides = [1, 1]} : vector<16x128xf32> to vector<15x128xf32>
    %74 = tpu.concatenate %73, %2 in 0 : vector<15x128xf32>, vector<1x128xf32> -> vector<16x128xf32>
    %75 = tpu.concatenate %72, %70, %74 in 1 : vector<16x128xf32>, vector<16x128xf32>, vector<16x128xf32> -> vector<16x384xf32>
    %c5 = arith.constant 5 : index
    %c0_36 = arith.constant 0 : index
    %c0_37 = arith.constant 0 : index
    %76 = vector.load %arg2[%c5, %c0_36, %c0_37] : memref<8x384x128xf32, #tpu.memory_space<vmem>>, vector<1x384x128xf32>
    %77 = vector.shape_cast %76 : vector<1x384x128xf32> to vector<384x128xf32>
    %cst_38 = arith.constant dense<0.000000e+00> : vector<16x128xf32>
    %78 = tpu.matmul %75, %77, %cst_38 {dimension_numbers = #tpu.dot_dimension_numbers<[1], [0], [0], [1], [0, 0, 1, 1], [], []>} : vector<16x384xf32>, vector<384x128xf32>, vector<16x128xf32> -> vector<16x128xf32>
    %c5_39 = arith.constant 5 : index
    %c0_40 = arith.constant 0 : index
    %c0_41 = arith.constant 0 : index
    %79 = vector.load %arg3[%c5_39, %c0_40, %c0_41] : memref<8x1x128xf32, #tpu.memory_space<vmem>>, vector<1x1x128xf32>
    %80 = vector.shape_cast %79 : vector<1x1x128xf32> to vector<1x128xf32>
    %81 = vector.broadcast %80 : vector<1x128xf32> to vector<16x128xf32>
    %82 = arith.addf %78, %81 : vector<16x128xf32>
    %83 = arith.addf %56, %82 : vector<16x128xf32>
    %84 = arith.addf %1, %83 : vector<16x128xf32>
    %85 = vector.extract_strided_slice %84 {offsets = [0, 0], sizes = [15, 128], strides = [1, 1]} : vector<16x128xf32> to vector<15x128xf32>
    %86 = tpu.concatenate %2, %85 in 0 : vector<1x128xf32>, vector<15x128xf32> -> vector<16x128xf32>
    %87 = vector.extract_strided_slice %84 {offsets = [1, 0], sizes = [15, 128], strides = [1, 1]} : vector<16x128xf32> to vector<15x128xf32>
    %88 = tpu.concatenate %87, %2 in 0 : vector<15x128xf32>, vector<1x128xf32> -> vector<16x128xf32>
    %89 = tpu.concatenate %86, %84, %88 in 1 : vector<16x128xf32>, vector<16x128xf32>, vector<16x128xf32> -> vector<16x384xf32>
    %c6 = arith.constant 6 : index
    %c0_42 = arith.constant 0 : index
    %c0_43 = arith.constant 0 : index
    %90 = vector.load %arg2[%c6, %c0_42, %c0_43] : memref<8x384x128xf32, #tpu.memory_space<vmem>>, vector<1x384x128xf32>
    %91 = vector.shape_cast %90 : vector<1x384x128xf32> to vector<384x128xf32>
    %cst_44 = arith.constant dense<0.000000e+00> : vector<16x128xf32>
    %92 = tpu.matmul %89, %91, %cst_44 {dimension_numbers = #tpu.dot_dimension_numbers<[1], [0], [0], [1], [0, 0, 1, 1], [], []>} : vector<16x384xf32>, vector<384x128xf32>, vector<16x128xf32> -> vector<16x128xf32>
    %c6_45 = arith.constant 6 : index
    %c0_46 = arith.constant 0 : index
    %c0_47 = arith.constant 0 : index
    %93 = vector.load %arg3[%c6_45, %c0_46, %c0_47] : memref<8x1x128xf32, #tpu.memory_space<vmem>>, vector<1x1x128xf32>
    %94 = vector.shape_cast %93 : vector<1x1x128xf32> to vector<1x128xf32>
    %95 = vector.broadcast %94 : vector<1x128xf32> to vector<16x128xf32>
    %96 = arith.addf %92, %95 : vector<16x128xf32>
    %cst_48 = arith.constant 0.000000e+00 : f32
    %97 = vector.broadcast %cst_48 : f32 to vector<16x128xf32>
    %98 = arith.maximumf %96, %97 : vector<16x128xf32>
    %99 = vector.extract_strided_slice %98 {offsets = [0, 0], sizes = [15, 128], strides = [1, 1]} : vector<16x128xf32> to vector<15x128xf32>
    %100 = tpu.concatenate %2, %99 in 0 : vector<1x128xf32>, vector<15x128xf32> -> vector<16x128xf32>
    %101 = vector.extract_strided_slice %98 {offsets = [1, 0], sizes = [15, 128], strides = [1, 1]} : vector<16x128xf32> to vector<15x128xf32>
    %102 = tpu.concatenate %101, %2 in 0 : vector<15x128xf32>, vector<1x128xf32> -> vector<16x128xf32>
    %103 = tpu.concatenate %100, %98, %102 in 1 : vector<16x128xf32>, vector<16x128xf32>, vector<16x128xf32> -> vector<16x384xf32>
    %c7 = arith.constant 7 : index
    %c0_49 = arith.constant 0 : index
    %c0_50 = arith.constant 0 : index
    %104 = vector.load %arg2[%c7, %c0_49, %c0_50] : memref<8x384x128xf32, #tpu.memory_space<vmem>>, vector<1x384x128xf32>
    %105 = vector.shape_cast %104 : vector<1x384x128xf32> to vector<384x128xf32>
    %cst_51 = arith.constant dense<0.000000e+00> : vector<16x128xf32>
    %106 = tpu.matmul %103, %105, %cst_51 {dimension_numbers = #tpu.dot_dimension_numbers<[1], [0], [0], [1], [0, 0, 1, 1], [], []>} : vector<16x384xf32>, vector<384x128xf32>, vector<16x128xf32> -> vector<16x128xf32>
    %c7_52 = arith.constant 7 : index
    %c0_53 = arith.constant 0 : index
    %c0_54 = arith.constant 0 : index
    %107 = vector.load %arg3[%c7_52, %c0_53, %c0_54] : memref<8x1x128xf32, #tpu.memory_space<vmem>>, vector<1x1x128xf32>
    %108 = vector.shape_cast %107 : vector<1x1x128xf32> to vector<1x128xf32>
    %109 = vector.broadcast %108 : vector<1x128xf32> to vector<16x128xf32>
    %110 = arith.addf %106, %109 : vector<16x128xf32>
    %111 = arith.addf %84, %110 : vector<16x128xf32>
    %112 = arith.addf %1, %111 : vector<16x128xf32>
    %c0_55 = arith.constant 0 : index
    %c0_56 = arith.constant 0 : index
    %c0_57 = arith.constant 0 : index
    %113 = vector.load %arg4[%c0_55, %c0_56, %c0_57] : memref<1x16x128xf32, #tpu.memory_space<vmem>>, vector<1x16x128xf32>
    %114 = vector.shape_cast %113 : vector<1x16x128xf32> to vector<16x128xf32>
    %115 = vector.shape_cast %112 : vector<16x128xf32> to vector<1x16x128xf32>
    tpu.vector_store %arg4[%c0_55, %c0_56, %c0_57], %115 {strides = array<i32>} : memref<1x16x128xf32, #tpu.memory_space<vmem>>, vector<1x16x128xf32>,
    return
  }
  func.func @transform_0(%arg0: i32) -> (i32, i32, i32) {
    %c0_i32 = arith.constant 0 : i32
    %c0_i32_0 = arith.constant 0 : i32
    %c0_i32_1 = arith.constant 0 : i32
    return %arg0, %c0_i32, %c0_i32_0 : i32, i32, i32
  }
  func.func @transform_1(%arg0: i32) -> (i32, i32, i32) {
    %c0_i32 = arith.constant 0 : i32
    %c0_i32_0 = arith.constant 0 : i32
    %c0_i32_1 = arith.constant 0 : i32
    %c0_i32_2 = arith.constant 0 : i32
    return %c0_i32, %c0_i32_0, %c0_i32_1 : i32, i32, i32
  }
  func.func @transform_2(%arg0: i32) -> (i32, i32, i32) {
    %c0_i32 = arith.constant 0 : i32
    %c0_i32_0 = arith.constant 0 : i32
    %c0_i32_1 = arith.constant 0 : i32
    %c0_i32_2 = arith.constant 0 : i32
    return %c0_i32, %c0_i32_0, %c0_i32_1 : i32, i32, i32
  }
  func.func @transform_3(%arg0: i32) -> (i32, i32, i32) {
    %c0_i32 = arith.constant 0 : i32
    %c0_i32_0 = arith.constant 0 : i32
    %c0_i32_1 = arith.constant 0 : i32
    return %arg0, %c0_i32, %c0_i32_0 : i32, i32, i32
  }
}

</mosaic_0001>

<llo_original>
// kernel: body_model_forward.1
$region0: #{body_model_forward.1}
  #allocation0 [shape = 'u32[]', space=smem, size = 0x4, offset = 0x4, fixed_abs, tag = 'smem constant byte address 0x4 - core index']
  #allocation1 [shape = 'u32[144,128]{1,0:T(1,128)}', space=vmem, size = 0x12000, scoped, tag = 'internal scratch']
  %s0 = inlined_call_operand.vmem [shape: f32[2,16,128], index: 0, kind: input, shape index: {}]
  %s1 = inlined_call_operand.hbm [shape: f32[8,384,128], index: 1, kind: input, shape index: {}]
  %s2 = inlined_call_operand.hbm [shape: f32[8,1,128], index: 2, kind: input, shape index: {}]
  %s3 = inlined_call_operand.vmem [shape: f32[2,16,128], index: 3, kind: output, shape index: {}]
  %s4 = sld [smem:[#allocation0]]
  $region53: #{body_model_forward.1} parent=0
    _
  %s6 = ssub.s32 1, %s4
  %s7 = scalar_select 0, %s6, %s4
  $region1: #{body_model_forward.1} parent=0
    #allocation2 [shape = 'u8[1572864]{0}', space=vmem, size = 0x180000, scoped, tag = 'input window, operand 1, single buffered']
    #allocation3 [shape = 's32[2]{0}', space=sflag, size = 0x8, scoped, tag = 'scoped memory for body_model_forward.1']
    #allocation4 [shape = 'u8[4096]{0}', space=vmem, size = 0x1000, scoped, tag = 'input window, operand 2, single buffered']
    #allocation5 [shape = 's32[1]{0}', space=sflag, size = 0x4, scoped, tag = 'scoped memory for body_model_forward.1']
    %8 = vsyncpa [#allocation3], 0
    %9 = vsyncpa [#allocation5], 0
    loop: start=0, step=1, limit=4
    $region2: #{body_model_forward.1} parent=1 // loop_pre_header
      _
    $region3: #{body_model_forward.1} parent=1 // loop_header
      %s11 = sphi 0, %s15
      %p12 = scmp.ge.s32.totalorder %s11, 4
      %s21 = sphi 0, %s23
      %s24 = sphi 0, %s21
      %s25 = sphi 0, %s24
      %s41 = sphi 0, %s25
      %s45 = sphi 0, %s45
      %s47 = sphi 0, %s45
      %s48 = sphi 0, %s47
      %s62 = sphi 0, %s48
      %s66 = sphi 0, %s66
      %s68 = sphi 0, %s66
      %s69 = sphi 0, %s68
      %s83 = sphi 0, %s69
      %s89 = sphi 0, %s91
      %s92 = sphi 0, %s89
      %s93 = sphi 0, %s92
      %s109 = sphi 0, %s93
    $region4: #{body_model_forward.1} parent=1 // loop_header_branch
      %14 = sbr.rel (%p12) target = $region8
    $region5: #{body_model_forward.1} parent=1 // loop_body
      %s16 = ssub.s32 %s11, 1
      %s17 = ssub.s32 %s11, 2
      %s18 = sadd.s32 %s11, 1
      %s19 = ssub.s32 %s11, %s18
      %p20 = scmp.eq.s32.totalorder %s19, 0
      %s22 = sadd.s32 %s21, 1
      %s23 = scalar_select %p20, %s21, %s22
      %p26 = pneg %p20
      %p27 = scmp.eq.s32.totalorder %s11, 1
      %p28 = por %p26, %p27
      %p29 = scmp.ne.s32.totalorder %s21, %s24
      %p30 = scmp.eq.s32.totalorder %s11, 0
      %p31 = por %p29, %p30
      %p32 = scmp.ne.s32.totalorder %s21, %s24
      %p33 = scmp.eq.s32.totalorder %s16, 1
      %p34 = por %p32, %p33
      %p35 = scmp.ne.s32.totalorder %s24, %s25
      %p36 = scmp.eq.s32.totalorder %s16, 0
      %p37 = por %p35, %p36
      %p38 = scmp.ne.s32.totalorder %s24, %s25
      %p39 = scmp.eq.s32.totalorder %s17, 1
      %p40 = por %p38, %p39
      %p42 = scmp.ne.s32.totalorder %s25, %s41
      %p43 = scmp.eq.s32.totalorder %s17, 0
      %p44 = por %p42, %p43
      %s46 = sadd.s32 %s45, 1
      %p49 = scmp.eq.s32.totalorder %s11, 1
      %p50 = scmp.ne.s32.totalorder %s45, %s47
      %p51 = scmp.eq.s32.totalorder %s11, 0
      %p52 = por %p50, %p51
      %p53 = scmp.ne.s32.totalorder %s45, %s47
      %p54 = scmp.eq.s32.totalorder %s16, 1
      %p55 = por %p53, %p54
      %p56 = scmp.ne.s32.totalorder %s47, %s48
      %p57 = scmp.eq.s32.totalorder %s16, 0
      %p58 = por %p56, %p57
      %p59 = scmp.ne.s32.totalorder %s47, %s48
      %p60 = scmp.eq.s32.totalorder %s17, 1
      %p61 = por %p59, %p60
      %p63 = scmp.ne.s32.totalorder %s48, %s62
      %p64 = scmp.eq.s32.totalorder %s17, 0
      %p65 = por %p63, %p64
      %s67 = sadd.s32 %s66, 1
      %p70 = scmp.eq.s32.totalorder %s11, 1
      %p71 = scmp.ne.s32.totalorder %s66, %s68
      %p72 = scmp.eq.s32.totalorder %s11, 0
      %p73 = por %p71, %p72
      %p74 = scmp.ne.s32.totalorder %s66, %s68
      %p75 = scmp.eq.s32.totalorder %s16, 1
      %p76 = por %p74, %p75
      %p77 = scmp.ne.s32.totalorder %s68, %s69
      %p78 = scmp.eq.s32.totalorder %s16, 0
      %p79 = por %p77, %p78
      %p80 = scmp.ne.s32.totalorder %s68, %s69
      %p81 = scmp.eq.s32.totalorder %s17, 1
      %p82 = por %p80, %p81
      %p84 = scmp.ne.s32.totalorder %s69, %s83
      %p85 = scmp.eq.s32.totalorder %s17, 0
      %p86 = por %p84, %p85
      %s87 = ssub.s32 %s11, %s18
      %p88 = scmp.eq.s32.totalorder %s87, 0
      %s90 = sadd.s32 %s89, 1
      %s91 = scalar_select %p88, %s89, %s90
      %p94 = pneg %p88
      %p95 = scmp.eq.s32.totalorder %s11, 1
      %p96 = por %p94, %p95
      %p97 = scmp.ne.s32.totalorder %s89, %s92
      %p98 = scmp.eq.s32.totalorder %s11, 0
      %p99 = por %p97, %p98
      %p100 = scmp.ne.s32.totalorder %s89, %s92
      %p101 = scmp.eq.s32.totalorder %s16, 1
      %p102 = por %p100, %p101
      %p103 = scmp.ne.s32.totalorder %s92, %s93
      %p104 = scmp.eq.s32.totalorder %s16, 0
      %p105 = por %p103, %p104
      %p106 = scmp.ne.s32.totalorder %s92, %s93
      %p107 = scmp.eq.s32.totalorder %s17, 1
      %p108 = por %p106, %p107
      %p110 = scmp.ne.s32.totalorder %s93, %s109
      %p111 = scmp.eq.s32.totalorder %s17, 0
      %p112 = por %p110, %p111
      %p113 = scmp.le.s32.totalorder 1, %s11
      %p114 = scmp.lt.s32.totalorder %s11, 3
      %p115 = pnand %p113, %p114
      %p116 = pneg %p115
      // Predicated region
      $region9: #{body_model_forward.1} parent=5 // pred_check
        _
      $region10: #{body_model_forward.1} parent=5 // pred_check_branch
        %118 = sbr.rel (%p115) target = $region12
      $region11: #{body_model_forward.1} parent=5 // pred_region
        %s119 = ssub.s32 %s11, 1
        // Predicated region
        $region13: #{body_model_forward.1} parent=11 // pred_check
          %p120 = pneg %p58
        $region14: #{body_model_forward.1} parent=11 // pred_check_branch
          %122 = sbr.rel (%p120) target = $region16
        $region15: #{body_model_forward.1} parent=11 // pred_region
          %s124 = ssub.s32 49152, 49152
          %125 = vsyncadd [#allocation3], %s124
          %s126 = sshll.u32 [#allocation2], 4
          %s127 = int_to_ptr.vmem [resolvable:$true] %s126
          %132 = dma.hbm_to_vmem [thread:$0]  %s1, 49152, %s127, [#allocation3], 128, 128, 8
        $region16: #{body_model_forward.1} parent=11 // pred_fallthru
          _
        // Predicated region
        $region17: #{body_model_forward.1} parent=11 // pred_check
          %p133 = pneg %p79
        $region18: #{body_model_forward.1} parent=11 // pred_check_branch
          %135 = sbr.rel (%p133) target = $region20
        $region19: #{body_model_forward.1} parent=11 // pred_region
          %s137 = ssub.s32 128, 128
          %138 = vsyncadd [#allocation5], %s137
          %s139 = sshll.u32 [#allocation4], 4
          %s140 = int_to_ptr.vmem [resolvable:$true] %s139
          %145 = dma.hbm_to_vmem [thread:$0]  %s2, 128, %s140, [#allocation5], 16, 16, 1
        $region20: #{body_model_forward.1} parent=11 // pred_fallthru
          _
      $region12: #{body_model_forward.1} parent=5 // pred_fallthru
        _
      %p146 = scmp.lt.s32.totalorder %s11, 2
      // Predicated region
      $region21: #{body_model_forward.1} parent=5 // pred_check
        %p147 = pneg %p146
      $region22: #{body_model_forward.1} parent=5 // pred_check_branch
        %149 = sbr.rel (%p147) target = $region24
      $region23: #{body_model_forward.1} parent=5 // pred_region
        // Predicated region
        $region25: #{body_model_forward.1} parent=23 // pred_check
          %p150 = pneg %p31
        $region26: #{body_model_forward.1} parent=23 // pred_check_branch
          %152 = sbr.rel (%p150) target = $region28
        $region27: #{body_model_forward.1} parent=23 // pred_region
          %p153 = scmp.lt.s32.totalorder %s11, 1
          %s154 = scalar_select %p153, %s11, 1
          %s155 = smul.addr %s154, 2
          %s156 = smul.addr %s155, 8
          %s157 = scalar_lea.vmem %s0, %s156
        $region28: #{body_model_forward.1} parent=23 // pred_fallthru
          _
      $region24: #{body_model_forward.1} parent=5 // pred_fallthru
        _
      %p158 = scmp.le.s32.totalorder 1, %s11
      %p159 = scmp.lt.s32.totalorder %s11, 3
      %p160 = pnand %p158, %p159
      %p161 = pneg %p160
      // Predicated region
      $region29: #{body_model_forward.1} parent=5 // pred_check
        _
      $region30: #{body_model_forward.1} parent=5 // pred_check_branch
        %163 = sbr.rel (%p160) target = $region32
      $region31: #{body_model_forward.1} parent=5 // pred_region
        %s164 = ssub.s32 %s11, 1
        // Predicated region
        $region33: #{body_model_forward.1} parent=31 // pred_check
          %p165 = pneg %p58
        $region34: #{body_model_forward.1} parent=31 // pred_check_branch
          %167 = sbr.rel (%p165) target = $region36
        $region35: #{body_model_forward.1} parent=31 // pred_region
          %168 = dma.done [#allocation3], 49152
        $region36: #{body_model_forward.1} parent=31 // pred_fallthru
          _
        // Predicated region
        $region37: #{body_model_forward.1} parent=31 // pred_check
          %p169 = pneg %p79
        $region38: #{body_model_forward.1} parent=31 // pred_check_branch
          %171 = sbr.rel (%p169) target = $region40
        $region39: #{body_model_forward.1} parent=31 // pred_region
          %172 = dma.done [#allocation5], 128
        $region40: #{body_model_forward.1} parent=31 // pred_fallthru
          _
        %p173 = scmp.lt.s32.totalorder %s16, 1
        %s174 = scalar_select %p173, %s16, 1
        %s175 = smul.addr %s174, 2
        %s176 = smul.addr %s175, 8
        %s177 = scalar_lea.vmem %s0, %s176
        %p178 = pneg %p37
        %p179 = pneg %p34
        %p180 = pneg %p58
        %p181 = pneg %p55
        %p182 = pneg %p79
        %p183 = pneg %p76
        %p184 = pneg %p105
        %p185 = pneg %p102
        %p186 = scmp.lt.s32.totalorder %s16, 1
        %s187 = scalar_select %p186, %s16, 1
        %s188 = smul.addr %s187, 2
        %s189 = smul.addr %s188, 8
        %s190 = scalar_lea.vmem %s3, %s189
        %p191 = scmp.lt.s32.totalorder %s16, 1
        %s192 = scalar_select %p191, %s16, 1
        %s193 = smul.addr %s192, 2
        %s194 = smul.addr %s193, 8
        %s195 = scalar_lea.vmem %s0, %s194
        %p196 = scmp.lt.s32.totalorder %s16, 1
        %s197 = scalar_select %p196, %s16, 1
        %s198 = smul.addr %s197, 2
        %s199 = smul.addr %s198, 8
        %s200 = scalar_lea.vmem %s3, %s199
        %v201 = vld [vmem:[%s195] sm:$0xff]
        %v202 = vld [vmem:[%s195 + $0x8] sm:$0xff]
        %vm205 = vcmask 1040384
        %v206 = vrot.slane %v201, 7
        %v207 = vrot.slane %v202, 7
        %v208 = vsel %vm205, %v206, %v207
        %v211 = vsel %vm205, 0.0, %v206
        %vm212 = vcmask 1046528
        %v213 = vrot.slane %v201, 1
        %v214 = vrot.slane %v202, 1
        %v215 = vsel %vm212, %v213, %v214
        %v218 = vsel %vm212, %v214, 0.0
        %v219 = vld [vmem:[#allocation2] sm:$0xff]
        %v220 = vld [vmem:[#allocation2 + $0x8] sm:$0xff]
        %v221 = vld [vmem:[#allocation2 + $0x10] sm:$0xff]
        %v222 = vld [vmem:[#allocation2 + $0x18] sm:$0xff]
        %v223 = vld [vmem:[#allocation2 + $0x20] sm:$0xff]
        %v224 = vld [vmem:[#allocation2 + $0x28] sm:$0xff]
        %v225 = vld [vmem:[#allocation2 + $0x30] sm:$0xff]
        %v226 = vld [vmem:[#allocation2 + $0x38] sm:$0xff]
        %v227 = vld [vmem:[#allocation2 + $0x40] sm:$0xff]
        %v228 = vld [vmem:[#allocation2 + $0x48] sm:$0xff]
        %v229 = vld [vmem:[#allocation2 + $0x50] sm:$0xff]
        %v230 = vld [vmem:[#allocation2 + $0x58] sm:$0xff]
        %v231 = vld [vmem:[#allocation2 + $0x60] sm:$0xff]
        %v232 = vld [vmem:[#allocation2 + $0x68] sm:$0xff]
        %v233 = vld [vmem:[#allocation2 + $0x70] sm:$0xff]
        %v234 = vld [vmem:[#allocation2 + $0x78] sm:$0xff]
        %v235 = vld [vmem:[#allocation2 + $0x80] sm:$0xff]
        %v236 = vld [vmem:[#allocation2 + $0x88] sm:$0xff]
        %v237 = vld [vmem:[#allocation2 + $0x90] sm:$0xff]
        %v238 = vld [vmem:[#allocation2 + $0x98] sm:$0xff]
        %v239 = vld [vmem:[#allocation2 + $0xa0] sm:$0xff]
        %v240 = vld [vmem:[#allocation2 + $0xa8] sm:$0xff]
        %v241 = vld [vmem:[#allocation2 + $0xb0] sm:$0xff]
        %v242 = vld [vmem:[#allocation2 + $0xb8] sm:$0xff]
        %v243 = vld [vmem:[#allocation2 + $0xc0] sm:$0xff]
        %v244 = vld [vmem:[#allocation2 + $0xc8] sm:$0xff]
        %v245 = vld [vmem:[#allocation2 + $0xd0] sm:$0xff]
        %v246 = vld [vmem:[#allocation2 + $0xd8] sm:$0xff]
        %v247 = vld [vmem:[#allocation2 + $0xe0] sm:$0xff]
        %v248 = vld [vmem:[#allocation2 + $0xe8] sm:$0xff]
        %v249 = vld [vmem:[#allocation2 + $0xf0] sm:$0xff]
        %v250 = vld [vmem:[#allocation2 + $0xf8] sm:$0xff]
        %v251 = vld [vmem:[#allocation2 + $0x100] sm:$0xff]
        %v252 = vld [vmem:[#allocation2 + $0x108] sm:$0xff]
        %v253 = vld [vmem:[#allocation2 + $0x110] sm:$0xff]
        %v254 = vld [vmem:[#allocation2 + $0x118] sm:$0xff]
        %v255 = vld [vmem:[#allocation2 + $0x120] sm:$0xff]
        %v256 = vld [vmem:[#allocation2 + $0x128] sm:$0xff]
        %v257 = vld [vmem:[#allocation2 + $0x130] sm:$0xff]
        %v258 = vld [vmem:[#allocation2 + $0x138] sm:$0xff]
        %v259 = vld [vmem:[#allocation2 + $0x140] sm:$0xff]
        %v260 = vld [vmem:[#allocation2 + $0x148] sm:$0xff]
        %v261 = vld [vmem:[#allocation2 + $0x150] sm:$0xff]
        %v262 = vld [vmem:[#allocation2 + $0x158] sm:$0xff]
        %v263 = vld [vmem:[#allocation2 + $0x160] sm:$0xff]
        %v264 = vld [vmem:[#allocation2 + $0x168] sm:$0xff]
        %v265 = vld [vmem:[#allocation2 + $0x170] sm:$0xff]
        %v266 = vld [vmem:[#allocation2 + $0x178] sm:$0xff]
        %v267 = vld [vmem:[#allocation4] sm:$0x1]
        %v269 = vlaneseq
        %v270 = vshrl.u32 %v269, 7
        %v271 = vsub.s32 0, %v270
        %v272 = vrot.slane %v267, %v271
        %274 = vmatprep.subr.mxu0 0.0
        %275 = vmatpush1.msra.mxu0 %v219
        %276 = vmatprep.subr.mxu0 0.0
        %277 = vmatpush1.msra.mxu0 %v220
        %278 = vmatprep.subr.mxu0 0.0
        %279 = vmatpush1.msra.mxu0 %v221
        %280 = vmatprep.subr.mxu0 0.0
        %281 = vmatpush1.msra.mxu0 %v222
        %282 = vmatprep.subr.mxu0 0.0
        %283 = vmatpush1.msra.mxu0 %v223
        %284 = vmatprep.subr.mxu0 0.0
        %285 = vmatpush1.msra.mxu0 %v224
        %286 = vmatprep.subr.mxu0 0.0
        %287 = vmatpush1.msra.mxu0 %v225
        %288 = vmatprep.subr.mxu0 0.0
        %289 = vmatpush1.msra.mxu0 %v226
        %290 = vmatprep.subr.mxu0 0.0
        %291 = vmatpush1.msra.mxu0 %v227
        %292 = vmatprep.subr.mxu0 0.0
        %293 = vmatpush1.msra.mxu0 %v228
        %294 = vmatprep.subr.mxu0 0.0
        %295 = vmatpush1.msra.mxu0 %v229
        %296 = vmatprep.subr.mxu0 0.0
        %297 = vmatpush1.msra.mxu0 %v230
        %298 = vmatprep.subr.mxu0 0.0
        %299 = vmatpush1.msra.mxu0 %v231
        %300 = vmatprep.subr.mxu0 0.0
        %301 = vmatpush1.msra.mxu0 %v232
        %302 = vmatprep.subr.mxu0 0.0
        %303 = vmatpush1.msra.mxu0 %v233
        %304 = vmatprep.subr.mxu0 0.0
        %305 = vmatpush1.msra.mxu0 %v234
        %306 = vmatprep.subr.mxu0 0.0
        %307 = vmatpush1.msra.mxu0 %v235
        %308 = vmatprep.subr.mxu0 0.0
        %309 = vmatpush1.msra.mxu0 %v236
        %310 = vmatprep.subr.mxu0 0.0
        %311 = vmatpush1.msra.mxu0 %v237
        %312 = vmatprep.subr.mxu0 0.0
        %313 = vmatpush1.msra.mxu0 %v238
        %314 = vmatprep.subr.mxu0 0.0
        %315 = vmatpush1.msra.mxu0 %v239
        %316 = vmatprep.subr.mxu0 0.0
        %317 = vmatpush1.msra.mxu0 %v240
        %318 = vmatprep.subr.mxu0 0.0
        %319 = vmatpush1.msra.mxu0 %v241
        %320 = vmatprep.subr.mxu0 0.0
        %321 = vmatpush1.msra.mxu0 %v242
        %322 = vmatprep.subr.mxu0 0.0
        %323 = vmatpush1.msra.mxu0 %v243
        %324 = vmatprep.subr.mxu0 0.0
        %325 = vmatpush1.msra.mxu0 %v244
        %326 = vmatprep.subr.mxu0 0.0
        %327 = vmatpush1.msra.mxu0 %v245
        %328 = vmatprep.subr.mxu0 0.0
        %329 = vmatpush1.msra.mxu0 %v246
        %330 = vmatprep.subr.mxu0 0.0
        %331 = vmatpush1.msra.mxu0 %v247
        %332 = vmatprep.subr.mxu0 0.0
        %333 = vmatpush1.msra.mxu0 %v248
        %334 = vmatprep.subr.mxu0 0.0
        %335 = vmatpush1.msra.mxu0 %v249
        %336 = vmatprep.subr.mxu0 0.0
        %337 = vmatpush1.msra.mxu0 %v250
        %338 = vmatprep.mubr.f32.mxu0 %v201
        %339 = vmatmul.mubr.f32.gmra.mrb[0].mxu0 %v211
        %v340 = vpop.f32.mrb[0].mxu0
        %v341 = vadd.f32 %v272, %v340
        %v342 = vpop.f32.mrb[0].mxu0
        %343 = vmatprep.mubr.f32.mxu0 %v202
        %344 = vmatmul.mubr.f32.gmra.mrb[0].mxu0 %v208
        %v345 = vpop.f32.mrb[0].mxu0
        %v346 = vadd.f32 %v272, %v345
        %v347 = vpop.f32.mrb[0].mxu0
        %348 = vdwg.mxu0
        %349 = vmatprep.subr.mxu0 0.0
        %350 = vmatpush1.msra.mxu0 %v251
        %351 = vmatprep.subr.mxu0 0.0
        %352 = vmatpush1.msra.mxu0 %v252
        %353 = vmatprep.subr.mxu0 0.0
        %354 = vmatpush1.msra.mxu0 %v253
        %355 = vmatprep.subr.mxu0 0.0
        %356 = vmatpush1.msra.mxu0 %v254
        %357 = vmatprep.subr.mxu0 0.0
        %358 = vmatpush1.msra.mxu0 %v255
        %359 = vmatprep.subr.mxu0 0.0
        %360 = vmatpush1.msra.mxu0 %v256
        %361 = vmatprep.subr.mxu0 0.0
        %362 = vmatpush1.msra.mxu0 %v257
        %363 = vmatprep.subr.mxu0 0.0
        %364 = vmatpush1.msra.mxu0 %v258
        %365 = vmatprep.subr.mxu0 0.0
        %366 = vmatpush1.msra.mxu0 %v259
        %367 = vmatprep.subr.mxu0 0.0
        %368 = vmatpush1.msra.mxu0 %v260
        %369 = vmatprep.subr.mxu0 0.0
        %370 = vmatpush1.msra.mxu0 %v261
        %371 = vmatprep.subr.mxu0 0.0
        %372 = vmatpush1.msra.mxu0 %v262
        %373 = vmatprep.subr.mxu0 0.0
        %374 = vmatpush1.msra.mxu0 %v263
        %375 = vmatprep.subr.mxu0 0.0
        %376 = vmatpush1.msra.mxu0 %v264
        %377 = vmatprep.subr.mxu0 0.0
        %378 = vmatpush1.msra.mxu0 %v265
        %379 = vmatprep.subr.mxu0 0.0
        %380 = vmatpush1.msra.mxu0 %v266
        %381 = vmatprep.subr.mxu0 0.0
        %382 = vmatpush1.msra.mxu0 0.0
        %383 = vmatprep.subr.mxu0 0.0
        %384 = vmatpush1.msra.mxu0 0.0
        %385 = vmatprep.subr.mxu0 0.0
        %386 = vmatpush1.msra.mxu0 0.0
        %387 = vmatprep.subr.mxu0 0.0
        %388 = vmatpush1.msra.mxu0 0.0
        %389 = vmatprep.subr.mxu0 0.0
        %390 = vmatpush1.msra.mxu0 0.0
        %391 = vmatprep.subr.mxu0 0.0
        %392 = vmatpush1.msra.mxu0 0.0
        %393 = vmatprep.subr.mxu0 0.0
        %394 = vmatpush1.msra.mxu0 0.0
        %395 = vmatprep.subr.mxu0 0.0
        %396 = vmatpush1.msra.mxu0 0.0
        %397 = vmatprep.subr.mxu0 0.0
        %398 = vmatpush1.msra.mxu0 0.0
        %399 = vmatprep.subr.mxu0 0.0
        %400 = vmatpush1.msra.mxu0 0.0
        %401 = vmatprep.subr.mxu0 0.0
        %402 = vmatpush1.msra.mxu0 0.0
        %403 = vmatprep.subr.mxu0 0.0
        %404 = vmatpush1.msra.mxu0 0.0
        %405 = vmatprep.subr.mxu0 0.0
        %406 = vmatpush1.msra.mxu0 0.0
        %407 = vmatprep.subr.mxu0 0.0
        %408 = vmatpush1.msra.mxu0 0.0
        %409 = vmatprep.subr.mxu0 0.0
        %410 = vmatpush1.msra.mxu0 0.0
        %411 = vmatprep.subr.mxu0 0.0
        %412 = vmatpush1.msra.mxu0 0.0
        %413 = vmatprep.mubr.f32.mxu0 0.0
        %414 = vmatmul.mubr.f32.gmra.mrb[0].mxu0 %v215
        %v415 = vpop.f32.mrb[0].mxu0
        %v416 = vadd.f32 %v341, %v415
        %v417 = vpop.f32.mrb[0].mxu0
        %418 = vmatprep.mubr.f32.mxu0 0.0
        %419 = vmatmul.mubr.f32.gmra.mrb[0].mxu0 %v218
        %v420 = vpop.f32.mrb[0].mxu0
        %v421 = vadd.f32 %v346, %v420
        %v422 = vpop.f32.mrb[0].mxu0
        %423 = vdwg.mxu0
        %v424 = vmax.f32 %v416, 0.0
        %v425 = vmax.f32 %v421, 0.0
        %v428 = vrot.slane %v424, 7
        %v429 = vrot.slane %v425, 7
        %v430 = vsel %vm205, %v428, %v429
        %v433 = vsel %vm205, 0.0, %v428
        %v434 = vrot.slane %v424, 1
        %v435 = vrot.slane %v425, 1
        %v436 = vsel %vm212, %v434, %v435
        %v439 = vsel %vm212, %v435, 0.0
        %s440 = scalar_lea.vmem [#allocation2], 384
        %v441 = vld [vmem:[%s440] sm:$0xff]
        %v442 = vld [vmem:[%s440 + $0x8] sm:$0xff]
        %v443 = vld [vmem:[%s440 + $0x10] sm:$0xff]
        %v444 = vld [vmem:[%s440 + $0x18] sm:$0xff]
        %v445 = vld [vmem:[%s440 + $0x20] sm:$0xff]
        %v446 = vld [vmem:[%s440 + $0x28] sm:$0xff]
        %v447 = vld [vmem:[%s440 + $0x30] sm:$0xff]
        %v448 = vld [vmem:[%s440 + $0x38] sm:$0xff]
        %v449 = vld [vmem:[%s440 + $0x40] sm:$0xff]
        %v450 = vld [vmem:[%s440 + $0x48] sm:$0xff]
        %v451 = vld [vmem:[%s440 + $0x50] sm:$0xff]
        %v452 = vld [vmem:[%s440 + $0x58] sm:$0xff]
        %v453 = vld [vmem:[%s440 + $0x60] sm:$0xff]
        %v454 = vld [vmem:[%s440 + $0x68] sm:$0xff]
        %v455 = vld [vmem:[%s440 + $0x70] sm:$0xff]
        %v456 = vld [vmem:[%s440 + $0x78] sm:$0xff]
        %v457 = vld [vmem:[%s440 + $0x80] sm:$0xff]
        %v458 = vld [vmem:[%s440 + $0x88] sm:$0xff]
        %v459 = vld [vmem:[%s440 + $0x90] sm:$0xff]
        %v460 = vld [vmem:[%s440 + $0x98] sm:$0xff]
        %v461 = vld [vmem:[%s440 + $0xa0] sm:$0xff]
        %v462 = vld [vmem:[%s440 + $0xa8] sm:$0xff]
        %v463 = vld [vmem:[%s440 + $0xb0] sm:$0xff]
        %v464 = vld [vmem:[%s440 + $0xb8] sm:$0xff]
        %v465 = vld [vmem:[%s440 + $0xc0] sm:$0xff]
        %v466 = vld [vmem:[%s440 + $0xc8] sm:$0xff]
        %v467 = vld [vmem:[%s440 + $0xd0] sm:$0xff]
        %v468 = vld [vmem:[%s440 + $0xd8] sm:$0xff]
        %v469 = vld [vmem:[%s440 + $0xe0] sm:$0xff]
        %v470 = vld [vmem:[%s440 + $0xe8] sm:$0xff]
        %v471 = vld [vmem:[%s440 + $0xf0] sm:$0xff]
        %v472 = vld [vmem:[%s440 + $0xf8] sm:$0xff]
        %v473 = vld [vmem:[%s440 + $0x100] sm:$0xff]
        %v474 = vld [vmem:[%s440 + $0x108] sm:$0xff]
        %v475 = vld [vmem:[%s440 + $0x110] sm:$0xff]
        %v476 = vld [vmem:[%s440 + $0x118] sm:$0xff]
        %v477 = vld [vmem:[%s440 + $0x120] sm:$0xff]
        %v478 = vld [vmem:[%s440 + $0x128] sm:$0xff]
        %v479 = vld [vmem:[%s440 + $0x130] sm:$0xff]
        %v480 = vld [vmem:[%s440 + $0x138] sm:$0xff]
        %v481 = vld [vmem:[%s440 + $0x140] sm:$0xff]
        %v482 = vld [vmem:[%s440 + $0x148] sm:$0xff]
        %v483 = vld [vmem:[%s440 + $0x150] sm:$0xff]
        %v484 = vld [vmem:[%s440 + $0x158] sm:$0xff]
        %v485 = vld [vmem:[%s440 + $0x160] sm:$0xff]
        %v486 = vld [vmem:[%s440 + $0x168] sm:$0xff]
        %v487 = vld [vmem:[%s440 + $0x170] sm:$0xff]
        %v488 = vld [vmem:[%s440 + $0x178] sm:$0xff]
        %s489 = scalar_lea.vmem [#allocation4], 1
        %v490 = vld [vmem:[%s489] sm:$0x1]
        %v492 = vlaneseq
        %v493 = vshrl.u32 %v492, 7
        %v494 = vsub.s32 0, %v493
        %v495 = vrot.slane %v490, %v494
        %497 = vmatprep.subr.mxu0 0.0
        %498 = vmatpush1.msra.mxu0 %v441
        %499 = vmatprep.subr.mxu0 0.0
        %500 = vmatpush1.msra.mxu0 %v442
        %501 = vmatprep.subr.mxu0 0.0
        %502 = vmatpush1.msra.mxu0 %v443
        %503 = vmatprep.subr.mxu0 0.0
        %504 = vmatpush1.msra.mxu0 %v444
        %505 = vmatprep.subr.mxu0 0.0
        %506 = vmatpush1.msra.mxu0 %v445
        %507 = vmatprep.subr.mxu0 0.0
        %508 = vmatpush1.msra.mxu0 %v446
        %509 = vmatprep.subr.mxu0 0.0
        %510 = vmatpush1.msra.mxu0 %v447
        %511 = vmatprep.subr.mxu0 0.0
        %512 = vmatpush1.msra.mxu0 %v448
        %513 = vmatprep.subr.mxu0 0.0
        %514 = vmatpush1.msra.mxu0 %v449
        %515 = vmatprep.subr.mxu0 0.0
        %516 = vmatpush1.msra.mxu0 %v450
        %517 = vmatprep.subr.mxu0 0.0
        %518 = vmatpush1.msra.mxu0 %v451
        %519 = vmatprep.subr.mxu0 0.0
        %520 = vmatpush1.msra.mxu0 %v452
        %521 = vmatprep.subr.mxu0 0.0
        %522 = vmatpush1.msra.mxu0 %v453
        %523 = vmatprep.subr.mxu0 0.0
        %524 = vmatpush1.msra.mxu0 %v454
        %525 = vmatprep.subr.mxu0 0.0
        %526 = vmatpush1.msra.mxu0 %v455
        %527 = vmatprep.subr.mxu0 0.0
        %528 = vmatpush1.msra.mxu0 %v456
        %529 = vmatprep.subr.mxu0 0.0
        %530 = vmatpush1.msra.mxu0 %v457
        %531 = vmatprep.subr.mxu0 0.0
        %532 = vmatpush1.msra.mxu0 %v458
        %533 = vmatprep.subr.mxu0 0.0
        %534 = vmatpush1.msra.mxu0 %v459
        %535 = vmatprep.subr.mxu0 0.0
        %536 = vmatpush1.msra.mxu0 %v460
        %537 = vmatprep.subr.mxu0 0.0
        %538 = vmatpush1.msra.mxu0 %v461
        %539 = vmatprep.subr.mxu0 0.0
        %540 = vmatpush1.msra.mxu0 %v462
        %541 = vmatprep.subr.mxu0 0.0
        %542 = vmatpush1.msra.mxu0 %v463
        %543 = vmatprep.subr.mxu0 0.0
        %544 = vmatpush1.msra.mxu0 %v464
        %545 = vmatprep.subr.mxu0 0.0
        %546 = vmatpush1.msra.mxu0 %v465
        %547 = vmatprep.subr.mxu0 0.0
        %548 = vmatpush1.msra.mxu0 %v466
        %549 = vmatprep.subr.mxu0 0.0
        %550 = vmatpush1.msra.mxu0 %v467
        %551 = vmatprep.subr.mxu0 0.0
        %552 = vmatpush1.msra.mxu0 %v468
        %553 = vmatprep.subr.mxu0 0.0
        %554 = vmatpush1.msra.mxu0 %v469
        %555 = vmatprep.subr.mxu0 0.0
        %556 = vmatpush1.msra.mxu0 %v470
        %557 = vmatprep.subr.mxu0 0.0
        %558 = vmatpush1.msra.mxu0 %v471
        %559 = vmatprep.subr.mxu0 0.0
        %560 = vmatpush1.msra.mxu0 %v472
        %561 = vmatprep.mubr.f32.mxu0 %v424
        %562 = vmatmul.mubr.f32.gmra.mrb[0].mxu0 %v433
        %v563 = vpop.f32.mrb[0].mxu0
        %v564 = vadd.f32 %v495, %v563
        %v565 = vpop.f32.mrb[0].mxu0
        %566 = vmatprep.mubr.f32.mxu0 %v425
        %567 = vmatmul.mubr.f32.gmra.mrb[0].mxu0 %v430
        %v568 = vpop.f32.mrb[0].mxu0
        %v569 = vadd.f32 %v495, %v568
        %v570 = vpop.f32.mrb[0].mxu0
        %571 = vdwg.mxu0
        %572 = vmatprep.subr.mxu0 0.0
        %573 = vmatpush1.msra.mxu0 %v473
        %574 = vmatprep.subr.mxu0 0.0
        %575 = vmatpush1.msra.mxu0 %v474
        %576 = vmatprep.subr.mxu0 0.0
        %577 = vmatpush1.msra.mxu0 %v475
        %578 = vmatprep.subr.mxu0 0.0
        %579 = vmatpush1.msra.mxu0 %v476
        %580 = vmatprep.subr.mxu0 0.0
        %581 = vmatpush1.msra.mxu0 %v477
        %582 = vmatprep.subr.mxu0 0.0
        %583 = vmatpush1.msra.mxu0 %v478
        %584 = vmatprep.subr.mxu0 0.0
        %585 = vmatpush1.msra.mxu0 %v479
        %586 = vmatprep.subr.mxu0 0.0
        %587 = vmatpush1.msra.mxu0 %v480
        %588 = vmatprep.subr.mxu0 0.0
        %589 = vmatpush1.msra.mxu0 %v481
        %590 = vmatprep.subr.mxu0 0.0
        %591 = vmatpush1.msra.mxu0 %v482
        %592 = vmatprep.subr.mxu0 0.0
        %593 = vmatpush1.msra.mxu0 %v483
        %594 = vmatprep.subr.mxu0 0.0
        %595 = vmatpush1.msra.mxu0 %v484
        %596 = vmatprep.subr.mxu0 0.0
        %597 = vmatpush1.msra.mxu0 %v485
        %598 = vmatprep.subr.mxu0 0.0
        %599 = vmatpush1.msra.mxu0 %v486
        %600 = vmatprep.subr.mxu0 0.0
        %601 = vmatpush1.msra.mxu0 %v487
        %602 = vmatprep.subr.mxu0 0.0
        %603 = vmatpush1.msra.mxu0 %v488
        %604 = vmatprep.subr.mxu0 0.0
        %605 = vmatpush1.msra.mxu0 0.0
        %606 = vmatprep.subr.mxu0 0.0
        %607 = vmatpush1.msra.mxu0 0.0
        %608 = vmatprep.subr.mxu0 0.0
        %609 = vmatpush1.msra.mxu0 0.0
        %610 = vmatprep.subr.mxu0 0.0
        %611 = vmatpush1.msra.mxu0 0.0
        %612 = vmatprep.subr.mxu0 0.0
        %613 = vmatpush1.msra.mxu0 0.0
        %614 = vmatprep.subr.mxu0 0.0
        %615 = vmatpush1.msra.mxu0 0.0
        %616 = vmatprep.subr.mxu0 0.0
        %617 = vmatpush1.msra.mxu0 0.0
        %618 = vmatprep.subr.mxu0 0.0
        %619 = vmatpush1.msra.mxu0 0.0
        %620 = vmatprep.subr.mxu0 0.0
        %621 = vmatpush1.msra.mxu0 0.0
        %622 = vmatprep.subr.mxu0 0.0
        %623 = vmatpush1.msra.mxu0 0.0
        %624 = vmatprep.subr.mxu0 0.0
        %625 = vmatpush1.msra.mxu0 0.0
        %626 = vmatprep.subr.mxu0 0.0
        %627 = vmatpush1.msra.mxu0 0.0
        %628 = vmatprep.subr.mxu0 0.0
        %629 = vmatpush1.msra.mxu0 0.0
        %630 = vmatprep.subr.mxu0 0.0
        %631 = vmatpush1.msra.mxu0 0.0
        %632 = vmatprep.subr.mxu0 0.0
        %633 = vmatpush1.msra.mxu0 0.0
        %634 = vmatprep.subr.mxu0 0.0
        %635 = vmatpush1.msra.mxu0 0.0
        %636 = vmatprep.mubr.f32.mxu0 0.0
        %637 = vmatmul.mubr.f32.gmra.mrb[0].mxu0 %v436
        %v638 = vpop.f32.mrb[0].mxu0
        %v639 = vadd.f32 %v564, %v638
        %v640 = vpop.f32.mrb[0].mxu0
        %641 = vmatprep.mubr.f32.mxu0 0.0
        %642 = vmatmul.mubr.f32.gmra.mrb[0].mxu0 %v439
        %v643 = vpop.f32.mrb[0].mxu0
        %v644 = vadd.f32 %v569, %v643
        %v645 = vpop.f32.mrb[0].mxu0
        %646 = vdwg.mxu0
        %v647 = vadd.f32 %v201, %v639
        %v648 = vadd.f32 %v202, %v644
        %v651 = vrot.slane %v647, 7
        %v652 = vrot.slane %v648, 7
        %v653 = vsel %vm205, %v651, %v652
        %v656 = vsel %vm205, 0.0, %v651
        %v657 = vrot.slane %v647, 1
        %v658 = vrot.slane %v648, 1
        %v659 = vsel %vm212, %v657, %v658
        %v662 = vsel %vm212, %v658, 0.0
        %s663 = scalar_lea.vmem [#allocation2], 768
        %v664 = vld [vmem:[%s663] sm:$0xff]
        %v665 = vld [vmem:[%s663 + $0x8] sm:$0xff]
        %v666 = vld [vmem:[%s663 + $0x10] sm:$0xff]
        %v667 = vld [vmem:[%s663 + $0x18] sm:$0xff]
        %v668 = vld [vmem:[%s663 + $0x20] sm:$0xff]
        %v669 = vld [vmem:[%s663 + $0x28] sm:$0xff]
        %v670 = vld [vmem:[%s663 + $0x30] sm:$0xff]
        %v671 = vld [vmem:[%s663 + $0x38] sm:$0xff]
        %v672 = vld [vmem:[%s663 + $0x40] sm:$0xff]
        %v673 = vld [vmem:[%s663 + $0x48] sm:$0xff]
        %v674 = vld [vmem:[%s663 + $0x50] sm:$0xff]
        %v675 = vld [vmem:[%s663 + $0x58] sm:$0xff]
        %v676 = vld [vmem:[%s663 + $0x60] sm:$0xff]
        %v677 = vld [vmem:[%s663 + $0x68] sm:$0xff]
        %v678 = vld [vmem:[%s663 + $0x70] sm:$0xff]
        %v679 = vld [vmem:[%s663 + $0x78] sm:$0xff]
        %v680 = vld [vmem:[%s663 + $0x80] sm:$0xff]
        %v681 = vld [vmem:[%s663 + $0x88] sm:$0xff]
        %v682 = vld [vmem:[%s663 + $0x90] sm:$0xff]
        %v683 = vld [vmem:[%s663 + $0x98] sm:$0xff]
        %v684 = vld [vmem:[%s663 + $0xa0] sm:$0xff]
        %v685 = vld [vmem:[%s663 + $0xa8] sm:$0xff]
        %v686 = vld [vmem:[%s663 + $0xb0] sm:$0xff]
        %v687 = vld [vmem:[%s663 + $0xb8] sm:$0xff]
        %v688 = vld [vmem:[%s663 + $0xc0] sm:$0xff]
        %v689 = vld [vmem:[%s663 + $0xc8] sm:$0xff]
        %v690 = vld [vmem:[%s663 + $0xd0] sm:$0xff]
        %v691 = vld [vmem:[%s663 + $0xd8] sm:$0xff]
        %v692 = vld [vmem:[%s663 + $0xe0] sm:$0xff]
        %v693 = vld [vmem:[%s663 + $0xe8] sm:$0xff]
        %v694 = vld [vmem:[%s663 + $0xf0] sm:$0xff]
        %v695 = vld [vmem:[%s663 + $0xf8] sm:$0xff]
        %v696 = vld [vmem:[%s663 + $0x100] sm:$0xff]
        %v697 = vld [vmem:[%s663 + $0x108] sm:$0xff]
        %v698 = vld [vmem:[%s663 + $0x110] sm:$0xff]
        %v699 = vld [vmem:[%s663 + $0x118] sm:$0xff]
        %v700 = vld [vmem:[%s663 + $0x120] sm:$0xff]
        %v701 = vld [vmem:[%s663 + $0x128] sm:$0xff]
        %v702 = vld [vmem:[%s663 + $0x130] sm:$0xff]
        %v703 = vld [vmem:[%s663 + $0x138] sm:$0xff]
        %v704 = vld [vmem:[%s663 + $0x140] sm:$0xff]
        %v705 = vld [vmem:[%s663 + $0x148] sm:$0xff]
        %v706 = vld [vmem:[%s663 + $0x150] sm:$0xff]
        %v707 = vld [vmem:[%s663 + $0x158] sm:$0xff]
        %v708 = vld [vmem:[%s663 + $0x160] sm:$0xff]
        %v709 = vld [vmem:[%s663 + $0x168] sm:$0xff]
        %v710 = vld [vmem:[%s663 + $0x170] sm:$0xff]
        %v711 = vld [vmem:[%s663 + $0x178] sm:$0xff]
        %s712 = scalar_lea.vmem [#allocation4], 2
        %v713 = vld [vmem:[%s712] sm:$0x1]
        %v715 = vlaneseq
        %v716 = vshrl.u32 %v715, 7
        %v717 = vsub.s32 0, %v716
        %v718 = vrot.slane %v713, %v717
        %720 = vmatprep.subr.mxu0 0.0
        %721 = vmatpush1.msra.mxu0 %v664
        %722 = vmatprep.subr.mxu0 0.0
        %723 = vmatpush1.msra.mxu0 %v665
        %724 = vmatprep.subr.mxu0 0.0
        %725 = vmatpush1.msra.mxu0 %v666
        %726 = vmatprep.subr.mxu0 0.0
        %727 = vmatpush1.msra.mxu0 %v667
        %728 = vmatprep.subr.mxu0 0.0
        %729 = vmatpush1.msra.mxu0 %v668
        %730 = vmatprep.subr.mxu0 0.0
        %731 = vmatpush1.msra.mxu0 %v669
        %732 = vmatprep.subr.mxu0 0.0
        %733 = vmatpush1.msra.mxu0 %v670
        %734 = vmatprep.subr.mxu0 0.0
        %735 = vmatpush1.msra.mxu0 %v671
        %736 = vmatprep.subr.mxu0 0.0
        %737 = vmatpush1.msra.mxu0 %v672
        %738 = vmatprep.subr.mxu0 0.0
        %739 = vmatpush1.msra.mxu0 %v673
        %740 = vmatprep.subr.mxu0 0.0
        %741 = vmatpush1.msra.mxu0 %v674
        %742 = vmatprep.subr.mxu0 0.0
        %743 = vmatpush1.msra.mxu0 %v675
        %744 = vmatprep.subr.mxu0 0.0
        %745 = vmatpush1.msra.mxu0 %v676
        %746 = vmatprep.subr.mxu0 0.0
        %747 = vmatpush1.msra.mxu0 %v677
        %748 = vmatprep.subr.mxu0 0.0
        %749 = vmatpush1.msra.mxu0 %v678
        %750 = vmatprep.subr.mxu0 0.0
        %751 = vmatpush1.msra.mxu0 %v679
        %752 = vmatprep.subr.mxu0 0.0
        %753 = vmatpush1.msra.mxu0 %v680
        %754 = vmatprep.subr.mxu0 0.0
        %755 = vmatpush1.msra.mxu0 %v681
        %756 = vmatprep.subr.mxu0 0.0
        %757 = vmatpush1.msra.mxu0 %v682
        %758 = vmatprep.subr.mxu0 0.0
        %759 = vmatpush1.msra.mxu0 %v683
        %760 = vmatprep.subr.mxu0 0.0
        %761 = vmatpush1.msra.mxu0 %v684
        %762 = vmatprep.subr.mxu0 0.0
        %763 = vmatpush1.msra.mxu0 %v685
        %764 = vmatprep.subr.mxu0 0.0
        %765 = vmatpush1.msra.mxu0 %v686
        %766 = vmatprep.subr.mxu0 0.0
        %767 = vmatpush1.msra.mxu0 %v687
        %768 = vmatprep.subr.mxu0 0.0
        %769 = vmatpush1.msra.mxu0 %v688
        %770 = vmatprep.subr.mxu0 0.0
        %771 = vmatpush1.msra.mxu0 %v689
        %772 = vmatprep.subr.mxu0 0.0
        %773 = vmatpush1.msra.mxu0 %v690
        %774 = vmatprep.subr.mxu0 0.0
        %775 = vmatpush1.msra.mxu0 %v691
        %776 = vmatprep.subr.mxu0 0.0
        %777 = vmatpush1.msra.mxu0 %v692
        %778 = vmatprep.subr.mxu0 0.0
        %779 = vmatpush1.msra.mxu0 %v693
        %780 = vmatprep.subr.mxu0 0.0
        %781 = vmatpush1.msra.mxu0 %v694
        %782 = vmatprep.subr.mxu0 0.0
        %783 = vmatpush1.msra.mxu0 %v695
        %784 = vmatprep.mubr.f32.mxu0 %v647
        %785 = vmatmul.mubr.f32.gmra.mrb[0].mxu0 %v656
        %v786 = vpop.f32.mrb[0].mxu0
        %v787 = vadd.f32 %v718, %v786
        %v788 = vpop.f32.mrb[0].mxu0
        %789 = vmatprep.mubr.f32.mxu0 %v648
        %790 = vmatmul.mubr.f32.gmra.mrb[0].mxu0 %v653
        %v791 = vpop.f32.mrb[0].mxu0
        %v792 = vadd.f32 %v718, %v791
        %v793 = vpop.f32.mrb[0].mxu0
        %794 = vdwg.mxu0
        %795 = vmatprep.subr.mxu0 0.0
        %796 = vmatpush1.msra.mxu0 %v696
        %797 = vmatprep.subr.mxu0 0.0
        %798 = vmatpush1.msra.mxu0 %v697
        %799 = vmatprep.subr.mxu0 0.0
        %800 = vmatpush1.msra.mxu0 %v698
        %801 = vmatprep.subr.mxu0 0.0
        %802 = vmatpush1.msra.mxu0 %v699
        %803 = vmatprep.subr.mxu0 0.0
        %804 = vmatpush1.msra.mxu0 %v700
        %805 = vmatprep.subr.mxu0 0.0
        %806 = vmatpush1.msra.mxu0 %v701
        %807 = vmatprep.subr.mxu0 0.0
        %808 = vmatpush1.msra.mxu0 %v702
        %809 = vmatprep.subr.mxu0 0.0
        %810 = vmatpush1.msra.mxu0 %v703
        %811 = vmatprep.subr.mxu0 0.0
        %812 = vmatpush1.msra.mxu0 %v704
        %813 = vmatprep.subr.mxu0 0.0
        %814 = vmatpush1.msra.mxu0 %v705
        %815 = vmatprep.subr.mxu0 0.0
        %816 = vmatpush1.msra.mxu0 %v706
        %817 = vmatprep.subr.mxu0 0.0
        %818 = vmatpush1.msra.mxu0 %v707
        %819 = vmatprep.subr.mxu0 0.0
        %820 = vmatpush1.msra.mxu0 %v708
        %821 = vmatprep.subr.mxu0 0.0
        %822 = vmatpush1.msra.mxu0 %v709
        %823 = vmatprep.subr.mxu0 0.0
        %824 = vmatpush1.msra.mxu0 %v710
        %825 = vmatprep.subr.mxu0 0.0
        %826 = vmatpush1.msra.mxu0 %v711
        %827 = vmatprep.subr.mxu0 0.0
        %828 = vmatpush1.msra.mxu0 0.0
        %829 = vmatprep.subr.mxu0 0.0
        %830 = vmatpush1.msra.mxu0 0.0
        %831 = vmatprep.subr.mxu0 0.0
        %832 = vmatpush1.msra.mxu0 0.0
        %833 = vmatprep.subr.mxu0 0.0
        %834 = vmatpush1.msra.mxu0 0.0
        %835 = vmatprep.subr.mxu0 0.0
        %836 = vmatpush1.msra.mxu0 0.0
        %837 = vmatprep.subr.mxu0 0.0
        %838 = vmatpush1.msra.mxu0 0.0
        %839 = vmatprep.subr.mxu0 0.0
        %840 = vmatpush1.msra.mxu0 0.0
        %841 = vmatprep.subr.mxu0 0.0
        %842 = vmatpush1.msra.mxu0 0.0
        %843 = vmatprep.subr.mxu0 0.0
        %844 = vmatpush1.msra.mxu0 0.0
        %845 = vmatprep.subr.mxu0 0.0
        %846 = vmatpush1.msra.mxu0 0.0
        %847 = vmatprep.subr.mxu0 0.0
        %848 = vmatpush1.msra.mxu0 0.0
        %849 = vmatprep.subr.mxu0 0.0
        %850 = vmatpush1.msra.mxu0 0.0
        %851 = vmatprep.subr.mxu0 0.0
        %852 = vmatpush1.msra.mxu0 0.0
        %853 = vmatprep.subr.mxu0 0.0
        %854 = vmatpush1.msra.mxu0 0.0
        %855 = vmatprep.subr.mxu0 0.0
        %856 = vmatpush1.msra.mxu0 0.0
        %857 = vmatprep.subr.mxu0 0.0
        %858 = vmatpush1.msra.mxu0 0.0
        %859 = vmatprep.mubr.f32.mxu0 0.0
        %860 = vmatmul.mubr.f32.gmra.mrb[0].mxu0 %v659
        %v861 = vpop.f32.mrb[0].mxu0
        %v862 = vadd.f32 %v787, %v861
        %v863 = vpop.f32.mrb[0].mxu0
        %864 = vmatprep.mubr.f32.mxu0 0.0
        %865 = vmatmul.mubr.f32.gmra.mrb[0].mxu0 %v662
        %v866 = vpop.f32.mrb[0].mxu0
        %v867 = vadd.f32 %v792, %v866
        %v868 = vpop.f32.mrb[0].mxu0
        %869 = vdwg.mxu0
        %v870 = vmax.f32 %v862, 0.0
        %v871 = vmax.f32 %v867, 0.0
        %v874 = vrot.slane %v870, 7
        %v875 = vrot.slane %v871, 7
        %v876 = vsel %vm205, %v874, %v875
        %v879 = vsel %vm205, 0.0, %v874
        %v880 = vrot.slane %v870, 1
        %v881 = vrot.slane %v871, 1
        %v882 = vsel %vm212, %v880, %v881
        %v885 = vsel %vm212, %v881, 0.0
        %s886 = scalar_lea.vmem [#allocation2], 1152
        %v887 = vld [vmem:[%s886] sm:$0xff]
        %v888 = vld [vmem:[%s886 + $0x8] sm:$0xff]
        %v889 = vld [vmem:[%s886 + $0x10] sm:$0xff]
        %v890 = vld [vmem:[%s886 + $0x18] sm:$0xff]
        %v891 = vld [vmem:[%s886 + $0x20] sm:$0xff]
        %v892 = vld [vmem:[%s886 + $0x28] sm:$0xff]
        %v893 = vld [vmem:[%s886 + $0x30] sm:$0xff]
        %v894 = vld [vmem:[%s886 + $0x38] sm:$0xff]
        %v895 = vld [vmem:[%s886 + $0x40] sm:$0xff]
        %v896 = vld [vmem:[%s886 + $0x48] sm:$0xff]
        %v897 = vld [vmem:[%s886 + $0x50] sm:$0xff]
        %v898 = vld [vmem:[%s886 + $0x58] sm:$0xff]
        %v899 = vld [vmem:[%s886 + $0x60] sm:$0xff]
        %v900 = vld [vmem:[%s886 + $0x68] sm:$0xff]
        %v901 = vld [vmem:[%s886 + $0x70] sm:$0xff]
        %v902 = vld [vmem:[%s886 + $0x78] sm:$0xff]
        %v903 = vld [vmem:[%s886 + $0x80] sm:$0xff]
        %v904 = vld [vmem:[%s886 + $0x88] sm:$0xff]
        %v905 = vld [vmem:[%s886 + $0x90] sm:$0xff]
        %v906 = vld [vmem:[%s886 + $0x98] sm:$0xff]
        %v907 = vld [vmem:[%s886 + $0xa0] sm:$0xff]
        %v908 = vld [vmem:[%s886 + $0xa8] sm:$0xff]
        %v909 = vld [vmem:[%s886 + $0xb0] sm:$0xff]
        %v910 = vld [vmem:[%s886 + $0xb8] sm:$0xff]
        %v911 = vld [vmem:[%s886 + $0xc0] sm:$0xff]
        %v912 = vld [vmem:[%s886 + $0xc8] sm:$0xff]
        %v913 = vld [vmem:[%s886 + $0xd0] sm:$0xff]
        %v914 = vld [vmem:[%s886 + $0xd8] sm:$0xff]
        %v915 = vld [vmem:[%s886 + $0xe0] sm:$0xff]
        %v916 = vld [vmem:[%s886 + $0xe8] sm:$0xff]
        %v917 = vld [vmem:[%s886 + $0xf0] sm:$0xff]
        %v918 = vld [vmem:[%s886 + $0xf8] sm:$0xff]
        %v919 = vld [vmem:[%s886 + $0x100] sm:$0xff]
        %v920 = vld [vmem:[%s886 + $0x108] sm:$0xff]
        %v921 = vld [vmem:[%s886 + $0x110] sm:$0xff]
        %v922 = vld [vmem:[%s886 + $0x118] sm:$0xff]
        %v923 = vld [vmem:[%s886 + $0x120] sm:$0xff]
        %v924 = vld [vmem:[%s886 + $0x128] sm:$0xff]
        %v925 = vld [vmem:[%s886 + $0x130] sm:$0xff]
        %v926 = vld [vmem:[%s886 + $0x138] sm:$0xff]
        %v927 = vld [vmem:[%s886 + $0x140] sm:$0xff]
        %v928 = vld [vmem:[%s886 + $0x148] sm:$0xff]
        %v929 = vld [vmem:[%s886 + $0x150] sm:$0xff]
        %v930 = vld [vmem:[%s886 + $0x158] sm:$0xff]
        %v931 = vld [vmem:[%s886 + $0x160] sm:$0xff]
        %v932 = vld [vmem:[%s886 + $0x168] sm:$0xff]
        %v933 = vld [vmem:[%s886 + $0x170] sm:$0xff]
        %v934 = vld [vmem:[%s886 + $0x178] sm:$0xff]
        %s935 = scalar_lea.vmem [#allocation4], 3
        %v936 = vld [vmem:[%s935] sm:$0x1]
        %v938 = vlaneseq
        %v939 = vshrl.u32 %v938, 7
        %v940 = vsub.s32 0, %v939
        %v941 = vrot.slane %v936, %v940
        %943 = vmatprep.subr.mxu0 0.0
        %944 = vmatpush1.msra.mxu0 %v887
        %945 = vmatprep.subr.mxu0 0.0
        %946 = vmatpush1.msra.mxu0 %v888
        %947 = vmatprep.subr.mxu0 0.0
        %948 = vmatpush1.msra.mxu0 %v889
        %949 = vmatprep.subr.mxu0 0.0
        %950 = vmatpush1.msra.mxu0 %v890
        %951 = vmatprep.subr.mxu0 0.0
        %952 = vmatpush1.msra.mxu0 %v891
        %953 = vmatprep.subr.mxu0 0.0
        %954 = vmatpush1.msra.mxu0 %v892
        %955 = vmatprep.subr.mxu0 0.0
        %956 = vmatpush1.msra.mxu0 %v893
        %957 = vmatprep.subr.mxu0 0.0
        %958 = vmatpush1.msra.mxu0 %v894
        %959 = vmatprep.subr.mxu0 0.0
        %960 = vmatpush1.msra.mxu0 %v895
        %961 = vmatprep.subr.mxu0 0.0
        %962 = vmatpush1.msra.mxu0 %v896
        %963 = vmatprep.subr.mxu0 0.0
        %964 = vmatpush1.msra.mxu0 %v897
        %965 = vmatprep.subr.mxu0 0.0
        %966 = vmatpush1.msra.mxu0 %v898
        %967 = vmatprep.subr.mxu0 0.0
        %968 = vmatpush1.msra.mxu0 %v899
        %969 = vmatprep.subr.mxu0 0.0
        %970 = vmatpush1.msra.mxu0 %v900
        %971 = vmatprep.subr.mxu0 0.0
        %972 = vmatpush1.msra.mxu0 %v901
        %973 = vmatprep.subr.mxu0 0.0
        %974 = vmatpush1.msra.mxu0 %v902
        %975 = vmatprep.subr.mxu0 0.0
        %976 = vmatpush1.msra.mxu0 %v903
        %977 = vmatprep.subr.mxu0 0.0
        %978 = vmatpush1.msra.mxu0 %v904
        %979 = vmatprep.subr.mxu0 0.0
        %980 = vmatpush1.msra.mxu0 %v905
        %981 = vmatprep.subr.mxu0 0.0
        %982 = vmatpush1.msra.mxu0 %v906
        %983 = vmatprep.subr.mxu0 0.0
        %984 = vmatpush1.msra.mxu0 %v907
        %985 = vmatprep.subr.mxu0 0.0
        %986 = vmatpush1.msra.mxu0 %v908
        %987 = vmatprep.subr.mxu0 0.0
        %988 = vmatpush1.msra.mxu0 %v909
        %989 = vmatprep.subr.mxu0 0.0
        %990 = vmatpush1.msra.mxu0 %v910
        %991 = vmatprep.subr.mxu0 0.0
        %992 = vmatpush1.msra.mxu0 %v911
        %993 = vmatprep.subr.mxu0 0.0
        %994 = vmatpush1.msra.mxu0 %v912
        %995 = vmatprep.subr.mxu0 0.0
        %996 = vmatpush1.msra.mxu0 %v913
        %997 = vmatprep.subr.mxu0 0.0
        %998 = vmatpush1.msra.mxu0 %v914
        %999 = vmatprep.subr.mxu0 0.0
        %1000 = vmatpush1.msra.mxu0 %v915
        %1001 = vmatprep.subr.mxu0 0.0
        %1002 = vmatpush1.msra.mxu0 %v916
        %1003 = vmatprep.subr.mxu0 0.0
        %1004 = vmatpush1.msra.mxu0 %v917
        %1005 = vmatprep.subr.mxu0 0.0
        %1006 = vmatpush1.msra.mxu0 %v918
        %1007 = vmatprep.mubr.f32.mxu0 %v870
        %1008 = vmatmul.mubr.f32.gmra.mrb[0].mxu0 %v879
        %v1009 = vpop.f32.mrb[0].mxu0
        %v1010 = vadd.f32 %v941, %v1009
        %v1011 = vpop.f32.mrb[0].mxu0
        %1012 = vmatprep.mubr.f32.mxu0 %v871
        %1013 = vmatmul.mubr.f32.gmra.mrb[0].mxu0 %v876
        %v1014 = vpop.f32.mrb[0].mxu0
        %v1015 = vadd.f32 %v941, %v1014
        %v1016 = vpop.f32.mrb[0].mxu0
        %1017 = vdwg.mxu0
        %1018 = vmatprep.subr.mxu0 0.0
        %1019 = vmatpush1.msra.mxu0 %v919
        %1020 = vmatprep.subr.mxu0 0.0
        %1021 = vmatpush1.msra.mxu0 %v920
        %1022 = vmatprep.subr.mxu0 0.0
        %1023 = vmatpush1.msra.mxu0 %v921
        %1024 = vmatprep.subr.mxu0 0.0
        %1025 = vmatpush1.msra.mxu0 %v922
        %1026 = vmatprep.subr.mxu0 0.0
        %1027 = vmatpush1.msra.mxu0 %v923
        %1028 = vmatprep.subr.mxu0 0.0
        %1029 = vmatpush1.msra.mxu0 %v924
        %1030 = vmatprep.subr.mxu0 0.0
        %1031 = vmatpush1.msra.mxu0 %v925
        %1032 = vmatprep.subr.mxu0 0.0
        %1033 = vmatpush1.msra.mxu0 %v926
        %1034 = vmatprep.subr.mxu0 0.0
        %1035 = vmatpush1.msra.mxu0 %v927
        %1036 = vmatprep.subr.mxu0 0.0
        %1037 = vmatpush1.msra.mxu0 %v928
        %1038 = vmatprep.subr.mxu0 0.0
        %1039 = vmatpush1.msra.mxu0 %v929
        %1040 = vmatprep.subr.mxu0 0.0
        %1041 = vmatpush1.msra.mxu0 %v930
        %1042 = vmatprep.subr.mxu0 0.0
        %1043 = vmatpush1.msra.mxu0 %v931
        %1044 = vmatprep.subr.mxu0 0.0
        %1045 = vmatpush1.msra.mxu0 %v932
        %1046 = vmatprep.subr.mxu0 0.0
        %1047 = vmatpush1.msra.mxu0 %v933
        %1048 = vmatprep.subr.mxu0 0.0
        %1049 = vmatpush1.msra.mxu0 %v934
        %1050 = vmatprep.subr.mxu0 0.0
        %1051 = vmatpush1.msra.mxu0 0.0
        %1052 = vmatprep.subr.mxu0 0.0
        %1053 = vmatpush1.msra.mxu0 0.0
        %1054 = vmatprep.subr.mxu0 0.0
        %1055 = vmatpush1.msra.mxu0 0.0
        %1056 = vmatprep.subr.mxu0 0.0
        %1057 = vmatpush1.msra.mxu0 0.0
        %1058 = vmatprep.subr.mxu0 0.0
        %1059 = vmatpush1.msra.mxu0 0.0
        %1060 = vmatprep.subr.mxu0 0.0
        %1061 = vmatpush1.msra.mxu0 0.0
        %1062 = vmatprep.subr.mxu0 0.0
        %1063 = vmatpush1.msra.mxu0 0.0
        %1064 = vmatprep.subr.mxu0 0.0
        %1065 = vmatpush1.msra.mxu0 0.0
        %1066 = vmatprep.subr.mxu0 0.0
        %1067 = vmatpush1.msra.mxu0 0.0
        %1068 = vmatprep.subr.mxu0 0.0
        %1069 = vmatpush1.msra.mxu0 0.0
        %1070 = vmatprep.subr.mxu0 0.0
        %1071 = vmatpush1.msra.mxu0 0.0
        %1072 = vmatprep.subr.mxu0 0.0
        %1073 = vmatpush1.msra.mxu0 0.0
        %1074 = vmatprep.subr.mxu0 0.0
        %1075 = vmatpush1.msra.mxu0 0.0
        %1076 = vmatprep.subr.mxu0 0.0
        %1077 = vmatpush1.msra.mxu0 0.0
        %1078 = vmatprep.subr.mxu0 0.0
        %1079 = vmatpush1.msra.mxu0 0.0
        %1080 = vmatprep.subr.mxu0 0.0
        %1081 = vmatpush1.msra.mxu0 0.0
        %1082 = vmatprep.mubr.f32.mxu0 0.0
        %1083 = vmatmul.mubr.f32.gmra.mrb[0].mxu0 %v882
        %v1084 = vpop.f32.mrb[0].mxu0
        %v1085 = vadd.f32 %v1010, %v1084
        %v1086 = vpop.f32.mrb[0].mxu0
        %1087 = vmatprep.mubr.f32.mxu0 0.0
        %1088 = vmatmul.mubr.f32.gmra.mrb[0].mxu0 %v885
        %v1089 = vpop.f32.mrb[0].mxu0
        %v1090 = vadd.f32 %v1015, %v1089
        %v1091 = vpop.f32.mrb[0].mxu0
        %1092 = vdwg.mxu0
        %v1093 = vadd.f32 %v647, %v1085
        %v1094 = vadd.f32 %v648, %v1090
        %v1097 = vrot.slane %v1093, 7
        %v1098 = vrot.slane %v1094, 7
        %v1099 = vsel %vm205, %v1097, %v1098
        %v1102 = vsel %vm205, 0.0, %v1097
        %v1103 = vrot.slane %v1093, 1
        %v1104 = vrot.slane %v1094, 1
        %v1105 = vsel %vm212, %v1103, %v1104
        %v1108 = vsel %vm212, %v1104, 0.0
        %s1109 = scalar_lea.vmem [#allocation2], 1536
        %v1110 = vld [vmem:[%s1109] sm:$0xff]
        %v1111 = vld [vmem:[%s1109 + $0x8] sm:$0xff]
        %v1112 = vld [vmem:[%s1109 + $0x10] sm:$0xff]
        %v1113 = vld [vmem:[%s1109 + $0x18] sm:$0xff]
        %v1114 = vld [vmem:[%s1109 + $0x20] sm:$0xff]
        %v1115 = vld [vmem:[%s1109 + $0x28] sm:$0xff]
        %v1116 = vld [vmem:[%s1109 + $0x30] sm:$0xff]
        %v1117 = vld [vmem:[%s1109 + $0x38] sm:$0xff]
        %v1118 = vld [vmem:[%s1109 + $0x40] sm:$0xff]
        %v1119 = vld [vmem:[%s1109 + $0x48] sm:$0xff]
        %v1120 = vld [vmem:[%s1109 + $0x50] sm:$0xff]
        %v1121 = vld [vmem:[%s1109 + $0x58] sm:$0xff]
        %v1122 = vld [vmem:[%s1109 + $0x60] sm:$0xff]
        %v1123 = vld [vmem:[%s1109 + $0x68] sm:$0xff]
        %v1124 = vld [vmem:[%s1109 + $0x70] sm:$0xff]
        %v1125 = vld [vmem:[%s1109 + $0x78] sm:$0xff]
        %v1126 = vld [vmem:[%s1109 + $0x80] sm:$0xff]
        %v1127 = vld [vmem:[%s1109 + $0x88] sm:$0xff]
        %v1128 = vld [vmem:[%s1109 + $0x90] sm:$0xff]
        %v1129 = vld [vmem:[%s1109 + $0x98] sm:$0xff]
        %v1130 = vld [vmem:[%s1109 + $0xa0] sm:$0xff]
        %v1131 = vld [vmem:[%s1109 + $0xa8] sm:$0xff]
        %v1132 = vld [vmem:[%s1109 + $0xb0] sm:$0xff]
        %v1133 = vld [vmem:[%s1109 + $0xb8] sm:$0xff]
        %v1134 = vld [vmem:[%s1109 + $0xc0] sm:$0xff]
        %v1135 = vld [vmem:[%s1109 + $0xc8] sm:$0xff]
        %v1136 = vld [vmem:[%s1109 + $0xd0] sm:$0xff]
        %v1137 = vld [vmem:[%s1109 + $0xd8] sm:$0xff]
        %v1138 = vld [vmem:[%s1109 + $0xe0] sm:$0xff]
        %v1139 = vld [vmem:[%s1109 + $0xe8] sm:$0xff]
        %v1140 = vld [vmem:[%s1109 + $0xf0] sm:$0xff]
        %v1141 = vld [vmem:[%s1109 + $0xf8] sm:$0xff]
        %v1142 = vld [vmem:[%s1109 + $0x100] sm:$0xff]
        %v1143 = vld [vmem:[%s1109 + $0x108] sm:$0xff]
        %v1144 = vld [vmem:[%s1109 + $0x110] sm:$0xff]
        %v1145 = vld [vmem:[%s1109 + $0x118] sm:$0xff]
        %v1146 = vld [vmem:[%s1109 + $0x120] sm:$0xff]
        %v1147 = vld [vmem:[%s1109 + $0x128] sm:$0xff]
        %v1148 = vld [vmem:[%s1109 + $0x130] sm:$0xff]
        %v1149 = vld [vmem:[%s1109 + $0x138] sm:$0xff]
        %v1150 = vld [vmem:[%s1109 + $0x140] sm:$0xff]
        %v1151 = vld [vmem:[%s1109 + $0x148] sm:$0xff]
        %v1152 = vld [vmem:[%s1109 + $0x150] sm:$0xff]
        %v1153 = vld [vmem:[%s1109 + $0x158] sm:$0xff]
        %v1154 = vld [vmem:[%s1109 + $0x160] sm:$0xff]
        %v1155 = vld [vmem:[%s1109 + $0x168] sm:$0xff]
        %v1156 = vld [vmem:[%s1109 + $0x170] sm:$0xff]
        %v1157 = vld [vmem:[%s1109 + $0x178] sm:$0xff]
        %s1158 = scalar_lea.vmem [#allocation4], 4
        %v1159 = vld [vmem:[%s1158] sm:$0x1]
        %v1161 = vlaneseq
        %v1162 = vshrl.u32 %v1161, 7
        %v1163 = vsub.s32 0, %v1162
        %v1164 = vrot.slane %v1159, %v1163
        %1166 = vmatprep.subr.mxu0 0.0
        %1167 = vmatpush1.msra.mxu0 %v1110
        %1168 = vmatprep.subr.mxu0 0.0
        %1169 = vmatpush1.msra.mxu0 %v1111
        %1170 = vmatprep.subr.mxu0 0.0
        %1171 = vmatpush1.msra.mxu0 %v1112
        %1172 = vmatprep.subr.mxu0 0.0
        %1173 = vmatpush1.msra.mxu0 %v1113
        %1174 = vmatprep.subr.mxu0 0.0
        %1175 = vmatpush1.msra.mxu0 %v1114
        %1176 = vmatprep.subr.mxu0 0.0
        %1177 = vmatpush1.msra.mxu0 %v1115
        %1178 = vmatprep.subr.mxu0 0.0
        %1179 = vmatpush1.msra.mxu0 %v1116
        %1180 = vmatprep.subr.mxu0 0.0
        %1181 = vmatpush1.msra.mxu0 %v1117
        %1182 = vmatprep.subr.mxu0 0.0
        %1183 = vmatpush1.msra.mxu0 %v1118
        %1184 = vmatprep.subr.mxu0 0.0
        %1185 = vmatpush1.msra.mxu0 %v1119
        %1186 = vmatprep.subr.mxu0 0.0
        %1187 = vmatpush1.msra.mxu0 %v1120
        %1188 = vmatprep.subr.mxu0 0.0
        %1189 = vmatpush1.msra.mxu0 %v1121
        %1190 = vmatprep.subr.mxu0 0.0
        %1191 = vmatpush1.msra.mxu0 %v1122
        %1192 = vmatprep.subr.mxu0 0.0
        %1193 = vmatpush1.msra.mxu0 %v1123
        %1194 = vmatprep.subr.mxu0 0.0
        %1195 = vmatpush1.msra.mxu0 %v1124
        %1196 = vmatprep.subr.mxu0 0.0
        %1197 = vmatpush1.msra.mxu0 %v1125
        %1198 = vmatprep.subr.mxu0 0.0
        %1199 = vmatpush1.msra.mxu0 %v1126
        %1200 = vmatprep.subr.mxu0 0.0
        %1201 = vmatpush1.msra.mxu0 %v1127
        %1202 = vmatprep.subr.mxu0 0.0
        %1203 = vmatpush1.msra.mxu0 %v1128
        %1204 = vmatprep.subr.mxu0 0.0
        %1205 = vmatpush1.msra.mxu0 %v1129
        %1206 = vmatprep.subr.mxu0 0.0
        %1207 = vmatpush1.msra.mxu0 %v1130
        %1208 = vmatprep.subr.mxu0 0.0
        %1209 = vmatpush1.msra.mxu0 %v1131
        %1210 = vmatprep.subr.mxu0 0.0
        %1211 = vmatpush1.msra.mxu0 %v1132
        %1212 = vmatprep.subr.mxu0 0.0
        %1213 = vmatpush1.msra.mxu0 %v1133
        %1214 = vmatprep.subr.mxu0 0.0
        %1215 = vmatpush1.msra.mxu0 %v1134
        %1216 = vmatprep.subr.mxu0 0.0
        %1217 = vmatpush1.msra.mxu0 %v1135
        %1218 = vmatprep.subr.mxu0 0.0
        %1219 = vmatpush1.msra.mxu0 %v1136
        %1220 = vmatprep.subr.mxu0 0.0
        %1221 = vmatpush1.msra.mxu0 %v1137
        %1222 = vmatprep.subr.mxu0 0.0
        %1223 = vmatpush1.msra.mxu0 %v1138
        %1224 = vmatprep.subr.mxu0 0.0
        %1225 = vmatpush1.msra.mxu0 %v1139
        %1226 = vmatprep.subr.mxu0 0.0
        %1227 = vmatpush1.msra.mxu0 %v1140
        %1228 = vmatprep.subr.mxu0 0.0
        %1229 = vmatpush1.msra.mxu0 %v1141
        %1230 = vmatprep.mubr.f32.mxu0 %v1093
        %1231 = vmatmul.mubr.f32.gmra.mrb[0].mxu0 %v1102
        %v1232 = vpop.f32.mrb[0].mxu0
        %v1233 = vadd.f32 %v1164, %v1232
        %v1234 = vpop.f32.mrb[0].mxu0
        %1235 = vmatprep.mubr.f32.mxu0 %v1094
        %1236 = vmatmul.mubr.f32.gmra.mrb[0].mxu0 %v1099
        %v1237 = vpop.f32.mrb[0].mxu0
        %v1238 = vadd.f32 %v1164, %v1237
        %v1239 = vpop.f32.mrb[0].mxu0
        %1240 = vdwg.mxu0
        %1241 = vmatprep.subr.mxu0 0.0
        %1242 = vmatpush1.msra.mxu0 %v1142
        %1243 = vmatprep.subr.mxu0 0.0
        %1244 = vmatpush1.msra.mxu0 %v1143
        %1245 = vmatprep.subr.mxu0 0.0
        %1246 = vmatpush1.msra.mxu0 %v1144
        %1247 = vmatprep.subr.mxu0 0.0
        %1248 = vmatpush1.msra.mxu0 %v1145
        %1249 = vmatprep.subr.mxu0 0.0
        %1250 = vmatpush1.msra.mxu0 %v1146
        %1251 = vmatprep.subr.mxu0 0.0
        %1252 = vmatpush1.msra.mxu0 %v1147
        %1253 = vmatprep.subr.mxu0 0.0
        %1254 = vmatpush1.msra.mxu0 %v1148
        %1255 = vmatprep.subr.mxu0 0.0
        %1256 = vmatpush1.msra.mxu0 %v1149
        %1257 = vmatprep.subr.mxu0 0.0
        %1258 = vmatpush1.msra.mxu0 %v1150
        %1259 = vmatprep.subr.mxu0 0.0
        %1260 = vmatpush1.msra.mxu0 %v1151
        %1261 = vmatprep.subr.mxu0 0.0
        %1262 = vmatpush1.msra.mxu0 %v1152
        %1263 = vmatprep.subr.mxu0 0.0
        %1264 = vmatpush1.msra.mxu0 %v1153
        %1265 = vmatprep.subr.mxu0 0.0
        %1266 = vmatpush1.msra.mxu0 %v1154
        %1267 = vmatprep.subr.mxu0 0.0
        %1268 = vmatpush1.msra.mxu0 %v1155
        %1269 = vmatprep.subr.mxu0 0.0
        %1270 = vmatpush1.msra.mxu0 %v1156
        %1271 = vmatprep.subr.mxu0 0.0
        %1272 = vmatpush1.msra.mxu0 %v1157
        %1273 = vmatprep.subr.mxu0 0.0
        %1274 = vmatpush1.msra.mxu0 0.0
        %1275 = vmatprep.subr.mxu0 0.0
        %1276 = vmatpush1.msra.mxu0 0.0
        %1277 = vmatprep.subr.mxu0 0.0
        %1278 = vmatpush1.msra.mxu0 0.0
        %1279 = vmatprep.subr.mxu0 0.0
        %1280 = vmatpush1.msra.mxu0 0.0
        %1281 = vmatprep.subr.mxu0 0.0
        %1282 = vmatpush1.msra.mxu0 0.0
        %1283 = vmatprep.subr.mxu0 0.0
        %1284 = vmatpush1.msra.mxu0 0.0
        %1285 = vmatprep.subr.mxu0 0.0
        %1286 = vmatpush1.msra.mxu0 0.0
        %1287 = vmatprep.subr.mxu0 0.0
        %1288 = vmatpush1.msra.mxu0 0.0
        %1289 = vmatprep.subr.mxu0 0.0
        %1290 = vmatpush1.msra.mxu0 0.0
        %1291 = vmatprep.subr.mxu0 0.0
        %1292 = vmatpush1.msra.mxu0 0.0
        %1293 = vmatprep.subr.mxu0 0.0
        %1294 = vmatpush1.msra.mxu0 0.0
        %1295 = vmatprep.subr.mxu0 0.0
        %1296 = vmatpush1.msra.mxu0 0.0
        %1297 = vmatprep.subr.mxu0 0.0
        %1298 = vmatpush1.msra.mxu0 0.0
        %1299 = vmatprep.subr.mxu0 0.0
        %1300 = vmatpush1.msra.mxu0 0.0
        %1301 = vmatprep.subr.mxu0 0.0
        %1302 = vmatpush1.msra.mxu0 0.0
        %1303 = vmatprep.subr.mxu0 0.0
        %1304 = vmatpush1.msra.mxu0 0.0
        %1305 = vmatprep.mubr.f32.mxu0 0.0
        %1306 = vmatmul.mubr.f32.gmra.mrb[0].mxu0 %v1105
        %v1307 = vpop.f32.mrb[0].mxu0
        %v1308 = vadd.f32 %v1233, %v1307
        %v1309 = vpop.f32.mrb[0].mxu0
        %1310 = vmatprep.mubr.f32.mxu0 0.0
        %1311 = vmatmul.mubr.f32.gmra.mrb[0].mxu0 %v1108
        %v1312 = vpop.f32.mrb[0].mxu0
        %v1313 = vadd.f32 %v1238, %v1312
        %v1314 = vpop.f32.mrb[0].mxu0
        %1315 = vdwg.mxu0
        %v1316 = vmax.f32 %v1308, 0.0
        %v1317 = vmax.f32 %v1313, 0.0
        %v1320 = vrot.slane %v1316, 7
        %v1321 = vrot.slane %v1317, 7
        %v1322 = vsel %vm205, %v1320, %v1321
        %v1325 = vsel %vm205, 0.0, %v1320
        %v1326 = vrot.slane %v1316, 1
        %v1327 = vrot.slane %v1317, 1
        %v1328 = vsel %vm212, %v1326, %v1327
        %v1331 = vsel %vm212, %v1327, 0.0
        %s1332 = scalar_lea.vmem [#allocation2], 1920
        %v1333 = vld [vmem:[%s1332] sm:$0xff]
        %v1334 = vld [vmem:[%s1332 + $0x8] sm:$0xff]
        %v1335 = vld [vmem:[%s1332 + $0x10] sm:$0xff]
        %v1336 = vld [vmem:[%s1332 + $0x18] sm:$0xff]
        %v1337 = vld [vmem:[%s1332 + $0x20] sm:$0xff]
        %v1338 = vld [vmem:[%s1332 + $0x28] sm:$0xff]
        %v1339 = vld [vmem:[%s1332 + $0x30] sm:$0xff]
        %v1340 = vld [vmem:[%s1332 + $0x38] sm:$0xff]
        %v1341 = vld [vmem:[%s1332 + $0x40] sm:$0xff]
        %v1342 = vld [vmem:[%s1332 + $0x48] sm:$0xff]
        %v1343 = vld [vmem:[%s1332 + $0x50] sm:$0xff]
        %v1344 = vld [vmem:[%s1332 + $0x58] sm:$0xff]
        %v1345 = vld [vmem:[%s1332 + $0x60] sm:$0xff]
        %v1346 = vld [vmem:[%s1332 + $0x68] sm:$0xff]
        %v1347 = vld [vmem:[%s1332 + $0x70] sm:$0xff]
        %v1348 = vld [vmem:[%s1332 + $0x78] sm:$0xff]
        %v1349 = vld [vmem:[%s1332 + $0x80] sm:$0xff]
        %v1350 = vld [vmem:[%s1332 + $0x88] sm:$0xff]
        %v1351 = vld [vmem:[%s1332 + $0x90] sm:$0xff]
        %v1352 = vld [vmem:[%s1332 + $0x98] sm:$0xff]
        %v1353 = vld [vmem:[%s1332 + $0xa0] sm:$0xff]
        %v1354 = vld [vmem:[%s1332 + $0xa8] sm:$0xff]
        %v1355 = vld [vmem:[%s1332 + $0xb0] sm:$0xff]
        %v1356 = vld [vmem:[%s1332 + $0xb8] sm:$0xff]
        %v1357 = vld [vmem:[%s1332 + $0xc0] sm:$0xff]
        %v1358 = vld [vmem:[%s1332 + $0xc8] sm:$0xff]
        %v1359 = vld [vmem:[%s1332 + $0xd0] sm:$0xff]
        %v1360 = vld [vmem:[%s1332 + $0xd8] sm:$0xff]
        %v1361 = vld [vmem:[%s1332 + $0xe0] sm:$0xff]
        %v1362 = vld [vmem:[%s1332 + $0xe8] sm:$0xff]
        %v1363 = vld [vmem:[%s1332 + $0xf0] sm:$0xff]
        %v1364 = vld [vmem:[%s1332 + $0xf8] sm:$0xff]
        %v1365 = vld [vmem:[%s1332 + $0x100] sm:$0xff]
        %v1366 = vld [vmem:[%s1332 + $0x108] sm:$0xff]
        %v1367 = vld [vmem:[%s1332 + $0x110] sm:$0xff]
        %v1368 = vld [vmem:[%s1332 + $0x118] sm:$0xff]
        %v1369 = vld [vmem:[%s1332 + $0x120] sm:$0xff]
        %v1370 = vld [vmem:[%s1332 + $0x128] sm:$0xff]
        %v1371 = vld [vmem:[%s1332 + $0x130] sm:$0xff]
        %v1372 = vld [vmem:[%s1332 + $0x138] sm:$0xff]
        %v1373 = vld [vmem:[%s1332 + $0x140] sm:$0xff]
        %v1374 = vld [vmem:[%s1332 + $0x148] sm:$0xff]
        %v1375 = vld [vmem:[%s1332 + $0x150] sm:$0xff]
        %v1376 = vld [vmem:[%s1332 + $0x158] sm:$0xff]
        %v1377 = vld [vmem:[%s1332 + $0x160] sm:$0xff]
        %v1378 = vld [vmem:[%s1332 + $0x168] sm:$0xff]
        %v1379 = vld [vmem:[%s1332 + $0x170] sm:$0xff]
        %v1380 = vld [vmem:[%s1332 + $0x178] sm:$0xff]
        %s1381 = scalar_lea.vmem [#allocation4], 5
        %v1382 = vld [vmem:[%s1381] sm:$0x1]
        %v1384 = vlaneseq
        %v1385 = vshrl.u32 %v1384, 7
        %v1386 = vsub.s32 0, %v1385
        %v1387 = vrot.slane %v1382, %v1386
        %1389 = vmatprep.subr.mxu0 0.0
        %1390 = vmatpush1.msra.mxu0 %v1333
        %1391 = vmatprep.subr.mxu0 0.0
        %1392 = vmatpush1.msra.mxu0 %v1334
        %1393 = vmatprep.subr.mxu0 0.0
        %1394 = vmatpush1.msra.mxu0 %v1335
        %1395 = vmatprep.subr.mxu0 0.0
        %1396 = vmatpush1.msra.mxu0 %v1336
        %1397 = vmatprep.subr.mxu0 0.0
        %1398 = vmatpush1.msra.mxu0 %v1337
        %1399 = vmatprep.subr.mxu0 0.0
        %1400 = vmatpush1.msra.mxu0 %v1338
        %1401 = vmatprep.subr.mxu0 0.0
        %1402 = vmatpush1.msra.mxu0 %v1339
        %1403 = vmatprep.subr.mxu0 0.0
        %1404 = vmatpush1.msra.mxu0 %v1340
        %1405 = vmatprep.subr.mxu0 0.0
        %1406 = vmatpush1.msra.mxu0 %v1341
        %1407 = vmatprep.subr.mxu0 0.0
        %1408 = vmatpush1.msra.mxu0 %v1342
        %1409 = vmatprep.subr.mxu0 0.0
        %1410 = vmatpush1.msra.mxu0 %v1343
        %1411 = vmatprep.subr.mxu0 0.0
        %1412 = vmatpush1.msra.mxu0 %v1344
        %1413 = vmatprep.subr.mxu0 0.0
        %1414 = vmatpush1.msra.mxu0 %v1345
        %1415 = vmatprep.subr.mxu0 0.0
        %1416 = vmatpush1.msra.mxu0 %v1346
        %1417 = vmatprep.subr.mxu0 0.0
        %1418 = vmatpush1.msra.mxu0 %v1347
        %1419 = vmatprep.subr.mxu0 0.0
        %1420 = vmatpush1.msra.mxu0 %v1348
        %1421 = vmatprep.subr.mxu0 0.0
        %1422 = vmatpush1.msra.mxu0 %v1349
        %1423 = vmatprep.subr.mxu0 0.0
        %1424 = vmatpush1.msra.mxu0 %v1350
        %1425 = vmatprep.subr.mxu0 0.0
        %1426 = vmatpush1.msra.mxu0 %v1351
        %1427 = vmatprep.subr.mxu0 0.0
        %1428 = vmatpush1.msra.mxu0 %v1352
        %1429 = vmatprep.subr.mxu0 0.0
        %1430 = vmatpush1.msra.mxu0 %v1353
        %1431 = vmatprep.subr.mxu0 0.0
        %1432 = vmatpush1.msra.mxu0 %v1354
        %1433 = vmatprep.subr.mxu0 0.0
        %1434 = vmatpush1.msra.mxu0 %v1355
        %1435 = vmatprep.subr.mxu0 0.0
        %1436 = vmatpush1.msra.mxu0 %v1356
        %1437 = vmatprep.subr.mxu0 0.0
        %1438 = vmatpush1.msra.mxu0 %v1357
        %1439 = vmatprep.subr.mxu0 0.0
        %1440 = vmatpush1.msra.mxu0 %v1358
        %1441 = vmatprep.subr.mxu0 0.0
        %1442 = vmatpush1.msra.mxu0 %v1359
        %1443 = vmatprep.subr.mxu0 0.0
        %1444 = vmatpush1.msra.mxu0 %v1360
        %1445 = vmatprep.subr.mxu0 0.0
        %1446 = vmatpush1.msra.mxu0 %v1361
        %1447 = vmatprep.subr.mxu0 0.0
        %1448 = vmatpush1.msra.mxu0 %v1362
        %1449 = vmatprep.subr.mxu0 0.0
        %1450 = vmatpush1.msra.mxu0 %v1363
        %1451 = vmatprep.subr.mxu0 0.0
        %1452 = vmatpush1.msra.mxu0 %v1364
        %1453 = vmatprep.mubr.f32.mxu0 %v1316
        %1454 = vmatmul.mubr.f32.gmra.mrb[0].mxu0 %v1325
        %v1455 = vpop.f32.mrb[0].mxu0
        %v1456 = vadd.f32 %v1387, %v1455
        %v1457 = vpop.f32.mrb[0].mxu0
        %1458 = vmatprep.mubr.f32.mxu0 %v1317
        %1459 = vmatmul.mubr.f32.gmra.mrb[0].mxu0 %v1322
        %v1460 = vpop.f32.mrb[0].mxu0
        %v1461 = vadd.f32 %v1387, %v1460
        %v1462 = vpop.f32.mrb[0].mxu0
        %1463 = vdwg.mxu0
        %1464 = vmatprep.subr.mxu0 0.0
        %1465 = vmatpush1.msra.mxu0 %v1365
        %1466 = vmatprep.subr.mxu0 0.0
        %1467 = vmatpush1.msra.mxu0 %v1366
        %1468 = vmatprep.subr.mxu0 0.0
        %1469 = vmatpush1.msra.mxu0 %v1367
        %1470 = vmatprep.subr.mxu0 0.0
        %1471 = vmatpush1.msra.mxu0 %v1368
        %1472 = vmatprep.subr.mxu0 0.0
        %1473 = vmatpush1.msra.mxu0 %v1369
        %1474 = vmatprep.subr.mxu0 0.0
        %1475 = vmatpush1.msra.mxu0 %v1370
        %1476 = vmatprep.subr.mxu0 0.0
        %1477 = vmatpush1.msra.mxu0 %v1371
        %1478 = vmatprep.subr.mxu0 0.0
        %1479 = vmatpush1.msra.mxu0 %v1372
        %1480 = vmatprep.subr.mxu0 0.0
        %1481 = vmatpush1.msra.mxu0 %v1373
        %1482 = vmatprep.subr.mxu0 0.0
        %1483 = vmatpush1.msra.mxu0 %v1374
        %1484 = vmatprep.subr.mxu0 0.0
        %1485 = vmatpush1.msra.mxu0 %v1375
        %1486 = vmatprep.subr.mxu0 0.0
        %1487 = vmatpush1.msra.mxu0 %v1376
        %1488 = vmatprep.subr.mxu0 0.0
        %1489 = vmatpush1.msra.mxu0 %v1377
        %1490 = vmatprep.subr.mxu0 0.0
        %1491 = vmatpush1.msra.mxu0 %v1378
        %1492 = vmatprep.subr.mxu0 0.0
        %1493 = vmatpush1.msra.mxu0 %v1379
        %1494 = vmatprep.subr.mxu0 0.0
        %1495 = vmatpush1.msra.mxu0 %v1380
        %1496 = vmatprep.subr.mxu0 0.0
        %1497 = vmatpush1.msra.mxu0 0.0
        %1498 = vmatprep.subr.mxu0 0.0
        %1499 = vmatpush1.msra.mxu0 0.0
        %1500 = vmatprep.subr.mxu0 0.0
        %1501 = vmatpush1.msra.mxu0 0.0
        %1502 = vmatprep.subr.mxu0 0.0
        %1503 = vmatpush1.msra.mxu0 0.0
        %1504 = vmatprep.subr.mxu0 0.0
        %1505 = vmatpush1.msra.mxu0 0.0
        %1506 = vmatprep.subr.mxu0 0.0
        %1507 = vmatpush1.msra.mxu0 0.0
        %1508 = vmatprep.subr.mxu0 0.0
        %1509 = vmatpush1.msra.mxu0 0.0
        %1510 = vmatprep.subr.mxu0 0.0
        %1511 = vmatpush1.msra.mxu0 0.0
        %1512 = vmatprep.subr.mxu0 0.0
        %1513 = vmatpush1.msra.mxu0 0.0
        %1514 = vmatprep.subr.mxu0 0.0
        %1515 = vmatpush1.msra.mxu0 0.0
        %1516 = vmatprep.subr.mxu0 0.0
        %1517 = vmatpush1.msra.mxu0 0.0
        %1518 = vmatprep.subr.mxu0 0.0
        %1519 = vmatpush1.msra.mxu0 0.0
        %1520 = vmatprep.subr.mxu0 0.0
        %1521 = vmatpush1.msra.mxu0 0.0
        %1522 = vmatprep.subr.mxu0 0.0
        %1523 = vmatpush1.msra.mxu0 0.0
        %1524 = vmatprep.subr.mxu0 0.0
        %1525 = vmatpush1.msra.mxu0 0.0
        %1526 = vmatprep.subr.mxu0 0.0
        %1527 = vmatpush1.msra.mxu0 0.0
        %1528 = vmatprep.mubr.f32.mxu0 0.0
        %1529 = vmatmul.mubr.f32.gmra.mrb[0].mxu0 %v1328
        %v1530 = vpop.f32.mrb[0].mxu0
        %v1531 = vadd.f32 %v1456, %v1530
        %v1532 = vpop.f32.mrb[0].mxu0
        %1533 = vmatprep.mubr.f32.mxu0 0.0
        %1534 = vmatmul.mubr.f32.gmra.mrb[0].mxu0 %v1331
        %v1535 = vpop.f32.mrb[0].mxu0
        %v1536 = vadd.f32 %v1461, %v1535
        %v1537 = vpop.f32.mrb[0].mxu0
        %1538 = vdwg.mxu0
        %v1539 = vadd.f32 %v1093, %v1531
        %v1540 = vadd.f32 %v1094, %v1536
        %v1541 = vadd.f32 %v201, %v1539
        %v1542 = vadd.f32 %v202, %v1540
        %v1545 = vrot.slane %v1541, 7
        %v1546 = vrot.slane %v1542, 7
        %v1547 = vsel %vm205, %v1545, %v1546
        %v1550 = vsel %vm205, 0.0, %v1545
        %v1551 = vrot.slane %v1541, 1
        %v1552 = vrot.slane %v1542, 1
        %v1553 = vsel %vm212, %v1551, %v1552
        %v1556 = vsel %vm212, %v1552, 0.0
        %s1557 = scalar_lea.vmem [#allocation2], 2304
        %v1558 = vld [vmem:[%s1557] sm:$0xff]
        %v1559 = vld [vmem:[%s1557 + $0x8] sm:$0xff]
        %v1560 = vld [vmem:[%s1557 + $0x10] sm:$0xff]
        %v1561 = vld [vmem:[%s1557 + $0x18] sm:$0xff]
        %v1562 = vld [vmem:[%s1557 + $0x20] sm:$0xff]
        %v1563 = vld [vmem:[%s1557 + $0x28] sm:$0xff]
        %v1564 = vld [vmem:[%s1557 + $0x30] sm:$0xff]
        %v1565 = vld [vmem:[%s1557 + $0x38] sm:$0xff]
        %v1566 = vld [vmem:[%s1557 + $0x40] sm:$0xff]
        %v1567 = vld [vmem:[%s1557 + $0x48] sm:$0xff]
        %v1568 = vld [vmem:[%s1557 + $0x50] sm:$0xff]
        %v1569 = vld [vmem:[%s1557 + $0x58] sm:$0xff]
        %v1570 = vld [vmem:[%s1557 + $0x60] sm:$0xff]
        %v1571 = vld [vmem:[%s1557 + $0x68] sm:$0xff]
        %v1572 = vld [vmem:[%s1557 + $0x70] sm:$0xff]
        %v1573 = vld [vmem:[%s1557 + $0x78] sm:$0xff]
        %v1574 = vld [vmem:[%s1557 + $0x80] sm:$0xff]
        %v1575 = vld [vmem:[%s1557 + $0x88] sm:$0xff]
        %v1576 = vld [vmem:[%s1557 + $0x90] sm:$0xff]
        %v1577 = vld [vmem:[%s1557 + $0x98] sm:$0xff]
        %v1578 = vld [vmem:[%s1557 + $0xa0] sm:$0xff]
        %v1579 = vld [vmem:[%s1557 + $0xa8] sm:$0xff]
        %v1580 = vld [vmem:[%s1557 + $0xb0] sm:$0xff]
        %v1581 = vld [vmem:[%s1557 + $0xb8] sm:$0xff]
        %v1582 = vld [vmem:[%s1557 + $0xc0] sm:$0xff]
        %v1583 = vld [vmem:[%s1557 + $0xc8] sm:$0xff]
        %v1584 = vld [vmem:[%s1557 + $0xd0] sm:$0xff]
        %v1585 = vld [vmem:[%s1557 + $0xd8] sm:$0xff]
        %v1586 = vld [vmem:[%s1557 + $0xe0] sm:$0xff]
        %v1587 = vld [vmem:[%s1557 + $0xe8] sm:$0xff]
        %v1588 = vld [vmem:[%s1557 + $0xf0] sm:$0xff]
        %v1589 = vld [vmem:[%s1557 + $0xf8] sm:$0xff]
        %v1590 = vld [vmem:[%s1557 + $0x100] sm:$0xff]
        %v1591 = vld [vmem:[%s1557 + $0x108] sm:$0xff]
        %v1592 = vld [vmem:[%s1557 + $0x110] sm:$0xff]
        %v1593 = vld [vmem:[%s1557 + $0x118] sm:$0xff]
        %v1594 = vld [vmem:[%s1557 + $0x120] sm:$0xff]
        %v1595 = vld [vmem:[%s1557 + $0x128] sm:$0xff]
        %v1596 = vld [vmem:[%s1557 + $0x130] sm:$0xff]
        %v1597 = vld [vmem:[%s1557 + $0x138] sm:$0xff]
        %v1598 = vld [vmem:[%s1557 + $0x140] sm:$0xff]
        %v1599 = vld [vmem:[%s1557 + $0x148] sm:$0xff]
        %v1600 = vld [vmem:[%s1557 + $0x150] sm:$0xff]
        %v1601 = vld [vmem:[%s1557 + $0x158] sm:$0xff]
        %v1602 = vld [vmem:[%s1557 + $0x160] sm:$0xff]
        %v1603 = vld [vmem:[%s1557 + $0x168] sm:$0xff]
        %v1604 = vld [vmem:[%s1557 + $0x170] sm:$0xff]
        %v1605 = vld [vmem:[%s1557 + $0x178] sm:$0xff]
        %s1606 = scalar_lea.vmem [#allocation4], 6
        %v1607 = vld [vmem:[%s1606] sm:$0x1]
        %v1609 = vlaneseq
        %v1610 = vshrl.u32 %v1609, 7
        %v1611 = vsub.s32 0, %v1610
        %v1612 = vrot.slane %v1607, %v1611
        %1614 = vmatprep.subr.mxu0 0.0
        %1615 = vmatpush1.msra.mxu0 %v1558
        %1616 = vmatprep.subr.mxu0 0.0
        %1617 = vmatpush1.msra.mxu0 %v1559
        %1618 = vmatprep.subr.mxu0 0.0
        %1619 = vmatpush1.msra.mxu0 %v1560
        %1620 = vmatprep.subr.mxu0 0.0
        %1621 = vmatpush1.msra.mxu0 %v1561
        %1622 = vmatprep.subr.mxu0 0.0
        %1623 = vmatpush1.msra.mxu0 %v1562
        %1624 = vmatprep.subr.mxu0 0.0
        %1625 = vmatpush1.msra.mxu0 %v1563
        %1626 = vmatprep.subr.mxu0 0.0
        %1627 = vmatpush1.msra.mxu0 %v1564
        %1628 = vmatprep.subr.mxu0 0.0
        %1629 = vmatpush1.msra.mxu0 %v1565
        %1630 = vmatprep.subr.mxu0 0.0
        %1631 = vmatpush1.msra.mxu0 %v1566
        %1632 = vmatprep.subr.mxu0 0.0
        %1633 = vmatpush1.msra.mxu0 %v1567
        %1634 = vmatprep.subr.mxu0 0.0
        %1635 = vmatpush1.msra.mxu0 %v1568
        %1636 = vmatprep.subr.mxu0 0.0
        %1637 = vmatpush1.msra.mxu0 %v1569
        %1638 = vmatprep.subr.mxu0 0.0
        %1639 = vmatpush1.msra.mxu0 %v1570
        %1640 = vmatprep.subr.mxu0 0.0
        %1641 = vmatpush1.msra.mxu0 %v1571
        %1642 = vmatprep.subr.mxu0 0.0
        %1643 = vmatpush1.msra.mxu0 %v1572
        %1644 = vmatprep.subr.mxu0 0.0
        %1645 = vmatpush1.msra.mxu0 %v1573
        %1646 = vmatprep.subr.mxu0 0.0
        %1647 = vmatpush1.msra.mxu0 %v1574
        %1648 = vmatprep.subr.mxu0 0.0
        %1649 = vmatpush1.msra.mxu0 %v1575
        %1650 = vmatprep.subr.mxu0 0.0
        %1651 = vmatpush1.msra.mxu0 %v1576
        %1652 = vmatprep.subr.mxu0 0.0
        %1653 = vmatpush1.msra.mxu0 %v1577
        %1654 = vmatprep.subr.mxu0 0.0
        %1655 = vmatpush1.msra.mxu0 %v1578
        %1656 = vmatprep.subr.mxu0 0.0
        %1657 = vmatpush1.msra.mxu0 %v1579
        %1658 = vmatprep.subr.mxu0 0.0
        %1659 = vmatpush1.msra.mxu0 %v1580
        %1660 = vmatprep.subr.mxu0 0.0
        %1661 = vmatpush1.msra.mxu0 %v1581
        %1662 = vmatprep.subr.mxu0 0.0
        %1663 = vmatpush1.msra.mxu0 %v1582
        %1664 = vmatprep.subr.mxu0 0.0
        %1665 = vmatpush1.msra.mxu0 %v1583
        %1666 = vmatprep.subr.mxu0 0.0
        %1667 = vmatpush1.msra.mxu0 %v1584
        %1668 = vmatprep.subr.mxu0 0.0
        %1669 = vmatpush1.msra.mxu0 %v1585
        %1670 = vmatprep.subr.mxu0 0.0
        %1671 = vmatpush1.msra.mxu0 %v1586
        %1672 = vmatprep.subr.mxu0 0.0
        %1673 = vmatpush1.msra.mxu0 %v1587
        %1674 = vmatprep.subr.mxu0 0.0
        %1675 = vmatpush1.msra.mxu0 %v1588
        %1676 = vmatprep.subr.mxu0 0.0
        %1677 = vmatpush1.msra.mxu0 %v1589
        %1678 = vmatprep.mubr.f32.mxu0 %v1541
        %1679 = vmatmul.mubr.f32.gmra.mrb[0].mxu0 %v1550
        %v1680 = vpop.f32.mrb[0].mxu0
        %v1681 = vadd.f32 %v1612, %v1680
        %v1682 = vpop.f32.mrb[0].mxu0
        %1683 = vmatprep.mubr.f32.mxu0 %v1542
        %1684 = vmatmul.mubr.f32.gmra.mrb[0].mxu0 %v1547
        %v1685 = vpop.f32.mrb[0].mxu0
        %v1686 = vadd.f32 %v1612, %v1685
        %v1687 = vpop.f32.mrb[0].mxu0
        %1688 = vdwg.mxu0
        %1689 = vmatprep.subr.mxu0 0.0
        %1690 = vmatpush1.msra.mxu0 %v1590
        %1691 = vmatprep.subr.mxu0 0.0
        %1692 = vmatpush1.msra.mxu0 %v1591
        %1693 = vmatprep.subr.mxu0 0.0
        %1694 = vmatpush1.msra.mxu0 %v1592
        %1695 = vmatprep.subr.mxu0 0.0
        %1696 = vmatpush1.msra.mxu0 %v1593
        %1697 = vmatprep.subr.mxu0 0.0
        %1698 = vmatpush1.msra.mxu0 %v1594
        %1699 = vmatprep.subr.mxu0 0.0
        %1700 = vmatpush1.msra.mxu0 %v1595
        %1701 = vmatprep.subr.mxu0 0.0
        %1702 = vmatpush1.msra.mxu0 %v1596
        %1703 = vmatprep.subr.mxu0 0.0
        %1704 = vmatpush1.msra.mxu0 %v1597
        %1705 = vmatprep.subr.mxu0 0.0
        %1706 = vmatpush1.msra.mxu0 %v1598
        %1707 = vmatprep.subr.mxu0 0.0
        %1708 = vmatpush1.msra.mxu0 %v1599
        %1709 = vmatprep.subr.mxu0 0.0
        %1710 = vmatpush1.msra.mxu0 %v1600
        %1711 = vmatprep.subr.mxu0 0.0
        %1712 = vmatpush1.msra.mxu0 %v1601
        %1713 = vmatprep.subr.mxu0 0.0
        %1714 = vmatpush1.msra.mxu0 %v1602
        %1715 = vmatprep.subr.mxu0 0.0
        %1716 = vmatpush1.msra.mxu0 %v1603
        %1717 = vmatprep.subr.mxu0 0.0
        %1718 = vmatpush1.msra.mxu0 %v1604
        %1719 = vmatprep.subr.mxu0 0.0
        %1720 = vmatpush1.msra.mxu0 %v1605
        %1721 = vmatprep.subr.mxu0 0.0
        %1722 = vmatpush1.msra.mxu0 0.0
        %1723 = vmatprep.subr.mxu0 0.0
        %1724 = vmatpush1.msra.mxu0 0.0
        %1725 = vmatprep.subr.mxu0 0.0
        %1726 = vmatpush1.msra.mxu0 0.0
        %1727 = vmatprep.subr.mxu0 0.0
        %1728 = vmatpush1.msra.mxu0 0.0
        %1729 = vmatprep.subr.mxu0 0.0
        %1730 = vmatpush1.msra.mxu0 0.0
        %1731 = vmatprep.subr.mxu0 0.0
        %1732 = vmatpush1.msra.mxu0 0.0
        %1733 = vmatprep.subr.mxu0 0.0
        %1734 = vmatpush1.msra.mxu0 0.0
        %1735 = vmatprep.subr.mxu0 0.0
        %1736 = vmatpush1.msra.mxu0 0.0
        %1737 = vmatprep.subr.mxu0 0.0
        %1738 = vmatpush1.msra.mxu0 0.0
        %1739 = vmatprep.subr.mxu0 0.0
        %1740 = vmatpush1.msra.mxu0 0.0
        %1741 = vmatprep.subr.mxu0 0.0
        %1742 = vmatpush1.msra.mxu0 0.0
        %1743 = vmatprep.subr.mxu0 0.0
        %1744 = vmatpush1.msra.mxu0 0.0
        %1745 = vmatprep.subr.mxu0 0.0
        %1746 = vmatpush1.msra.mxu0 0.0
        %1747 = vmatprep.subr.mxu0 0.0
        %1748 = vmatpush1.msra.mxu0 0.0
        %1749 = vmatprep.subr.mxu0 0.0
        %1750 = vmatpush1.msra.mxu0 0.0
        %1751 = vmatprep.subr.mxu0 0.0
        %1752 = vmatpush1.msra.mxu0 0.0
        %1753 = vmatprep.mubr.f32.mxu0 0.0
        %1754 = vmatmul.mubr.f32.gmra.mrb[0].mxu0 %v1553
        %v1755 = vpop.f32.mrb[0].mxu0
        %v1756 = vadd.f32 %v1681, %v1755
        %v1757 = vpop.f32.mrb[0].mxu0
        %1758 = vmatprep.mubr.f32.mxu0 0.0
        %1759 = vmatmul.mubr.f32.gmra.mrb[0].mxu0 %v1556
        %v1760 = vpop.f32.mrb[0].mxu0
        %v1761 = vadd.f32 %v1686, %v1760
        %v1762 = vpop.f32.mrb[0].mxu0
        %1763 = vdwg.mxu0
        %v1764 = vmax.f32 %v1756, 0.0
        %v1765 = vmax.f32 %v1761, 0.0
        %v1768 = vrot.slane %v1764, 7
        %v1769 = vrot.slane %v1765, 7
        %v1770 = vsel %vm205, %v1768, %v1769
        %v1773 = vsel %vm205, 0.0, %v1768
        %v1774 = vrot.slane %v1764, 1
        %v1775 = vrot.slane %v1765, 1
        %v1776 = vsel %vm212, %v1774, %v1775
        %v1779 = vsel %vm212, %v1775, 0.0
        %s1780 = scalar_lea.vmem [#allocation2], 2688
        %v1781 = vld [vmem:[%s1780] sm:$0xff]
        %v1782 = vld [vmem:[%s1780 + $0x8] sm:$0xff]
        %v1783 = vld [vmem:[%s1780 + $0x10] sm:$0xff]
        %v1784 = vld [vmem:[%s1780 + $0x18] sm:$0xff]
        %v1785 = vld [vmem:[%s1780 + $0x20] sm:$0xff]
        %v1786 = vld [vmem:[%s1780 + $0x28] sm:$0xff]
        %v1787 = vld [vmem:[%s1780 + $0x30] sm:$0xff]
        %v1788 = vld [vmem:[%s1780 + $0x38] sm:$0xff]
        %v1789 = vld [vmem:[%s1780 + $0x40] sm:$0xff]
        %v1790 = vld [vmem:[%s1780 + $0x48] sm:$0xff]
        %v1791 = vld [vmem:[%s1780 + $0x50] sm:$0xff]
        %v1792 = vld [vmem:[%s1780 + $0x58] sm:$0xff]
        %v1793 = vld [vmem:[%s1780 + $0x60] sm:$0xff]
        %v1794 = vld [vmem:[%s1780 + $0x68] sm:$0xff]
        %v1795 = vld [vmem:[%s1780 + $0x70] sm:$0xff]
        %v1796 = vld [vmem:[%s1780 + $0x78] sm:$0xff]
        %v1797 = vld [vmem:[%s1780 + $0x80] sm:$0xff]
        %v1798 = vld [vmem:[%s1780 + $0x88] sm:$0xff]
        %v1799 = vld [vmem:[%s1780 + $0x90] sm:$0xff]
        %v1800 = vld [vmem:[%s1780 + $0x98] sm:$0xff]
        %v1801 = vld [vmem:[%s1780 + $0xa0] sm:$0xff]
        %v1802 = vld [vmem:[%s1780 + $0xa8] sm:$0xff]
        %v1803 = vld [vmem:[%s1780 + $0xb0] sm:$0xff]
        %v1804 = vld [vmem:[%s1780 + $0xb8] sm:$0xff]
        %v1805 = vld [vmem:[%s1780 + $0xc0] sm:$0xff]
        %v1806 = vld [vmem:[%s1780 + $0xc8] sm:$0xff]
        %v1807 = vld [vmem:[%s1780 + $0xd0] sm:$0xff]
        %v1808 = vld [vmem:[%s1780 + $0xd8] sm:$0xff]
        %v1809 = vld [vmem:[%s1780 + $0xe0] sm:$0xff]
        %v1810 = vld [vmem:[%s1780 + $0xe8] sm:$0xff]
        %v1811 = vld [vmem:[%s1780 + $0xf0] sm:$0xff]
        %v1812 = vld [vmem:[%s1780 + $0xf8] sm:$0xff]
        %v1813 = vld [vmem:[%s1780 + $0x100] sm:$0xff]
        %v1814 = vld [vmem:[%s1780 + $0x108] sm:$0xff]
        %v1815 = vld [vmem:[%s1780 + $0x110] sm:$0xff]
        %v1816 = vld [vmem:[%s1780 + $0x118] sm:$0xff]
        %v1817 = vld [vmem:[%s1780 + $0x120] sm:$0xff]
        %v1818 = vld [vmem:[%s1780 + $0x128] sm:$0xff]
        %v1819 = vld [vmem:[%s1780 + $0x130] sm:$0xff]
        %v1820 = vld [vmem:[%s1780 + $0x138] sm:$0xff]
        %v1821 = vld [vmem:[%s1780 + $0x140] sm:$0xff]
        %v1822 = vld [vmem:[%s1780 + $0x148] sm:$0xff]
        %v1823 = vld [vmem:[%s1780 + $0x150] sm:$0xff]
        %v1824 = vld [vmem:[%s1780 + $0x158] sm:$0xff]
        %v1825 = vld [vmem:[%s1780 + $0x160] sm:$0xff]
        %v1826 = vld [vmem:[%s1780 + $0x168] sm:$0xff]
        %v1827 = vld [vmem:[%s1780 + $0x170] sm:$0xff]
        %v1828 = vld [vmem:[%s1780 + $0x178] sm:$0xff]
        %s1829 = scalar_lea.vmem [#allocation4], 7
        %v1830 = vld [vmem:[%s1829] sm:$0x1]
        %v1832 = vlaneseq
        %v1833 = vshrl.u32 %v1832, 7
        %v1834 = vsub.s32 0, %v1833
        %v1835 = vrot.slane %v1830, %v1834
        %1837 = vmatprep.subr.mxu0 0.0
        %1838 = vmatpush1.msra.mxu0 %v1781
        %1839 = vmatprep.subr.mxu0 0.0
        %1840 = vmatpush1.msra.mxu0 %v1782
        %1841 = vmatprep.subr.mxu0 0.0
        %1842 = vmatpush1.msra.mxu0 %v1783
        %1843 = vmatprep.subr.mxu0 0.0
        %1844 = vmatpush1.msra.mxu0 %v1784
        %1845 = vmatprep.subr.mxu0 0.0
        %1846 = vmatpush1.msra.mxu0 %v1785
        %1847 = vmatprep.subr.mxu0 0.0
        %1848 = vmatpush1.msra.mxu0 %v1786
        %1849 = vmatprep.subr.mxu0 0.0
        %1850 = vmatpush1.msra.mxu0 %v1787
        %1851 = vmatprep.subr.mxu0 0.0
        %1852 = vmatpush1.msra.mxu0 %v1788
        %1853 = vmatprep.subr.mxu0 0.0
        %1854 = vmatpush1.msra.mxu0 %v1789
        %1855 = vmatprep.subr.mxu0 0.0
        %1856 = vmatpush1.msra.mxu0 %v1790
        %1857 = vmatprep.subr.mxu0 0.0
        %1858 = vmatpush1.msra.mxu0 %v1791
        %1859 = vmatprep.subr.mxu0 0.0
        %1860 = vmatpush1.msra.mxu0 %v1792
        %1861 = vmatprep.subr.mxu0 0.0
        %1862 = vmatpush1.msra.mxu0 %v1793
        %1863 = vmatprep.subr.mxu0 0.0
        %1864 = vmatpush1.msra.mxu0 %v1794
        %1865 = vmatprep.subr.mxu0 0.0
        %1866 = vmatpush1.msra.mxu0 %v1795
        %1867 = vmatprep.subr.mxu0 0.0
        %1868 = vmatpush1.msra.mxu0 %v1796
        %1869 = vmatprep.subr.mxu0 0.0
        %1870 = vmatpush1.msra.mxu0 %v1797
        %1871 = vmatprep.subr.mxu0 0.0
        %1872 = vmatpush1.msra.mxu0 %v1798
        %1873 = vmatprep.subr.mxu0 0.0
        %1874 = vmatpush1.msra.mxu0 %v1799
        %1875 = vmatprep.subr.mxu0 0.0
        %1876 = vmatpush1.msra.mxu0 %v1800
        %1877 = vmatprep.subr.mxu0 0.0
        %1878 = vmatpush1.msra.mxu0 %v1801
        %1879 = vmatprep.subr.mxu0 0.0
        %1880 = vmatpush1.msra.mxu0 %v1802
        %1881 = vmatprep.subr.mxu0 0.0
        %1882 = vmatpush1.msra.mxu0 %v1803
        %1883 = vmatprep.subr.mxu0 0.0
        %1884 = vmatpush1.msra.mxu0 %v1804
        %1885 = vmatprep.subr.mxu0 0.0
        %1886 = vmatpush1.msra.mxu0 %v1805
        %1887 = vmatprep.subr.mxu0 0.0
        %1888 = vmatpush1.msra.mxu0 %v1806
        %1889 = vmatprep.subr.mxu0 0.0
        %1890 = vmatpush1.msra.mxu0 %v1807
        %1891 = vmatprep.subr.mxu0 0.0
        %1892 = vmatpush1.msra.mxu0 %v1808
        %1893 = vmatprep.subr.mxu0 0.0
        %1894 = vmatpush1.msra.mxu0 %v1809
        %1895 = vmatprep.subr.mxu0 0.0
        %1896 = vmatpush1.msra.mxu0 %v1810
        %1897 = vmatprep.subr.mxu0 0.0
        %1898 = vmatpush1.msra.mxu0 %v1811
        %1899 = vmatprep.subr.mxu0 0.0
        %1900 = vmatpush1.msra.mxu0 %v1812
        %1901 = vmatprep.mubr.f32.mxu0 %v1764
        %1902 = vmatmul.mubr.f32.gmra.mrb[0].mxu0 %v1773
        %v1903 = vpop.f32.mrb[0].mxu0
        %v1904 = vadd.f32 %v1835, %v1903
        %v1905 = vpop.f32.mrb[0].mxu0
        %1906 = vmatprep.mubr.f32.mxu0 %v1765
        %1907 = vmatmul.mubr.f32.gmra.mrb[0].mxu0 %v1770
        %v1908 = vpop.f32.mrb[0].mxu0
        %v1909 = vadd.f32 %v1835, %v1908
        %v1910 = vpop.f32.mrb[0].mxu0
        %1911 = vdwg.mxu0
        %1912 = vmatprep.subr.mxu0 0.0
        %1913 = vmatpush1.msra.mxu0 %v1813
        %1914 = vmatprep.subr.mxu0 0.0
        %1915 = vmatpush1.msra.mxu0 %v1814
        %1916 = vmatprep.subr.mxu0 0.0
        %1917 = vmatpush1.msra.mxu0 %v1815
        %1918 = vmatprep.subr.mxu0 0.0
        %1919 = vmatpush1.msra.mxu0 %v1816
        %1920 = vmatprep.subr.mxu0 0.0
        %1921 = vmatpush1.msra.mxu0 %v1817
        %1922 = vmatprep.subr.mxu0 0.0
        %1923 = vmatpush1.msra.mxu0 %v1818
        %1924 = vmatprep.subr.mxu0 0.0
        %1925 = vmatpush1.msra.mxu0 %v1819
        %1926 = vmatprep.subr.mxu0 0.0
        %1927 = vmatpush1.msra.mxu0 %v1820
        %1928 = vmatprep.subr.mxu0 0.0
        %1929 = vmatpush1.msra.mxu0 %v1821
        %1930 = vmatprep.subr.mxu0 0.0
        %1931 = vmatpush1.msra.mxu0 %v1822
        %1932 = vmatprep.subr.mxu0 0.0
        %1933 = vmatpush1.msra.mxu0 %v1823
        %1934 = vmatprep.subr.mxu0 0.0
        %1935 = vmatpush1.msra.mxu0 %v1824
        %1936 = vmatprep.subr.mxu0 0.0
        %1937 = vmatpush1.msra.mxu0 %v1825
        %1938 = vmatprep.subr.mxu0 0.0
        %1939 = vmatpush1.msra.mxu0 %v1826
        %1940 = vmatprep.subr.mxu0 0.0
        %1941 = vmatpush1.msra.mxu0 %v1827
        %1942 = vmatprep.subr.mxu0 0.0
        %1943 = vmatpush1.msra.mxu0 %v1828
        %1944 = vmatprep.subr.mxu0 0.0
        %1945 = vmatpush1.msra.mxu0 0.0
        %1946 = vmatprep.subr.mxu0 0.0
        %1947 = vmatpush1.msra.mxu0 0.0
        %1948 = vmatprep.subr.mxu0 0.0
        %1949 = vmatpush1.msra.mxu0 0.0
        %1950 = vmatprep.subr.mxu0 0.0
        %1951 = vmatpush1.msra.mxu0 0.0
        %1952 = vmatprep.subr.mxu0 0.0
        %1953 = vmatpush1.msra.mxu0 0.0
        %1954 = vmatprep.subr.mxu0 0.0
        %1955 = vmatpush1.msra.mxu0 0.0
        %1956 = vmatprep.subr.mxu0 0.0
        %1957 = vmatpush1.msra.mxu0 0.0
        %1958 = vmatprep.subr.mxu0 0.0
        %1959 = vmatpush1.msra.mxu0 0.0
        %1960 = vmatprep.subr.mxu0 0.0
        %1961 = vmatpush1.msra.mxu0 0.0
        %1962 = vmatprep.subr.mxu0 0.0
        %1963 = vmatpush1.msra.mxu0 0.0
        %1964 = vmatprep.subr.mxu0 0.0
        %1965 = vmatpush1.msra.mxu0 0.0
        %1966 = vmatprep.subr.mxu0 0.0
        %1967 = vmatpush1.msra.mxu0 0.0
        %1968 = vmatprep.subr.mxu0 0.0
        %1969 = vmatpush1.msra.mxu0 0.0
        %1970 = vmatprep.subr.mxu0 0.0
        %1971 = vmatpush1.msra.mxu0 0.0
        %1972 = vmatprep.subr.mxu0 0.0
        %1973 = vmatpush1.msra.mxu0 0.0
        %1974 = vmatprep.subr.mxu0 0.0
        %1975 = vmatpush1.msra.mxu0 0.0
        %1976 = vmatprep.mubr.f32.mxu0 0.0
        %1977 = vmatmul.mubr.f32.gmra.mrb[0].mxu0 %v1776
        %v1978 = vpop.f32.mrb[0].mxu0
        %v1979 = vadd.f32 %v1904, %v1978
        %v1980 = vpop.f32.mrb[0].mxu0
        %1981 = vmatprep.mubr.f32.mxu0 0.0
        %1982 = vmatmul.mubr.f32.gmra.mrb[0].mxu0 %v1779
        %v1983 = vpop.f32.mrb[0].mxu0
        %v1984 = vadd.f32 %v1909, %v1983
        %v1985 = vpop.f32.mrb[0].mxu0
        %1986 = vdwg.mxu0
        %v1987 = vadd.f32 %v1541, %v1979
        %v1988 = vadd.f32 %v1542, %v1984
        %v1989 = vadd.f32 %v201, %v1987
        %v1990 = vadd.f32 %v202, %v1988
        %1991 = vst [vmem:[%s200] sm:$0xff] %v1989
        %1992 = vst [vmem:[%s200 + $0x8] sm:$0xff] %v1990
        %p1993 = scmp.lt.s32.totalorder %s16, 1
        %s1994 = scalar_select %p1993, %s16, 1
        %s1995 = smul.addr %s1994, 2
        %s1996 = smul.addr %s1995, 8
        %s1997 = scalar_lea.vmem %s3, %s1996
        // Predicated region
        $region41: #{body_model_forward.1} parent=31 // pred_check
          %p1998 = pneg %p102
        $region42: #{body_model_forward.1} parent=31 // pred_check_branch
          %2000 = sbr.rel (%p1998) target = $region44
        $region43: #{body_model_forward.1} parent=31 // pred_region
          _
        $region44: #{body_model_forward.1} parent=31 // pred_fallthru
          _
      $region32: #{body_model_forward.1} parent=5 // pred_fallthru
        _
      %p2001 = scmp.le.s32.totalorder 2, %s11
      // Predicated region
      $region45: #{body_model_forward.1} parent=5 // pred_check
        %p2002 = pneg %p2001
      $region46: #{body_model_forward.1} parent=5 // pred_check_branch
        %2004 = sbr.rel (%p2002) target = $region48
      $region47: #{body_model_forward.1} parent=5 // pred_region
        %s2005 = ssub.s32 %s11, 2
        // Predicated region
        $region49: #{body_model_forward.1} parent=47 // pred_check
          %p2006 = pneg %p108
        $region50: #{body_model_forward.1} parent=47 // pred_check_branch
          %2008 = sbr.rel (%p2006) target = $region52
        $region51: #{body_model_forward.1} parent=47 // pred_region
          %p2009 = scmp.lt.s32.totalorder %s17, 1
          %s2010 = scalar_select %p2009, %s17, 1
          %s2011 = smul.addr %s2010, 2
          %s2012 = smul.addr %s2011, 8
          %s2013 = scalar_lea.vmem %s3, %s2012
        $region52: #{body_model_forward.1} parent=47 // pred_fallthru
          _
      $region48: #{body_model_forward.1} parent=5 // pred_fallthru
        _
    $region6: #{body_model_forward.1} parent=1 // loop_footer
      %s15 = sadd.s32 1, %s11
    $region7: #{body_model_forward.1} parent=1 // loop_footer_branch
      %10 = sbr.rel target = $region3
    $region8: #{body_model_forward.1} parent=1 // loop_exit
      _
    %2014 = vsyncpa [#allocation3], 1
    %s2015 = scalar_lea.sflag [#allocation3], 1
    %2016 = vsyncpa %s2015, 1
    %2017 = vsyncpa [#allocation5], 1

</llo_original>
